<compile_context>
chip_gen: v6e
topology: v6e:2x2x1
jax: 0.10.0
libtpu: 0.0.40
codegen_flags: <defaults>
</compile_context>

<pallas_src>
import jax
import jax.numpy as jnp
from jax.experimental import pallas as pl
from jax.experimental.pallas import tpu as pltpu


def _round_up(x, m):
    return (x + m - 1) // m * m


def _choose_tile_b(B, tile_b):
    """Batch tile: 16-aligned single tile for small B (minimal padding),
    256-aligned (MXU height on v6e/v7x, 2x v5e MXU) tiles for large B."""
    if B <= tile_b:
        return _round_up(B, 16)
    n_steps = -(-B // tile_b)
    tb = _round_up(-(-B // n_steps), 256)
    return min(tb, _round_up(tile_b, 256))


def _silu_bf16(h):
    # SiLU(x) = x*sigmoid(x) = 0.5*x*(1 + tanh(x/2)): exact identity, a single
    # EUP transcendental per element.  Evaluated in bf16 (bf16 VALU/EUP on
    # v6e/v7x run at 2x rate and halve vreg pressure; v5e upcasts internally).
    h = h.astype(jnp.bfloat16)
    return h * (jnp.tanh(h * 0.5) * 0.5 + 0.5)


def fc_encoder_kernel(x_ref, w1_ref, b1_ref, w2_ref, b2_ref, w3_ref, b3_ref, o_ref):
    # x_ref: (TILE_B, in_dim) f32 (cast to bf16 here); weights bf16;
    # biases f32; output bf16 (lane-dense padded latent).
    x = x_ref[...].astype(jnp.bfloat16)

    h1 = jnp.dot(x, w1_ref[...], preferred_element_type=jnp.float32) + b1_ref[...]
    h1 = _silu_bf16(h1)

    h2 = jnp.dot(h1, w2_ref[...], preferred_element_type=jnp.float32) + b2_ref[...]
    h2 = _silu_bf16(h2)

    h3 = jnp.dot(h2, w3_ref[...], preferred_element_type=jnp.float32) + b3_ref[...]
    o_ref[...] = _silu_bf16(h3)


def fc_encoder(x, params, *, tile_b=512):
    """x: (B, C, H, W) float32. params: (w1, b1, w2, b2, w3, b3) with
    w_i stored as (in_features, out_features), b_i as (1, out_features)."""
    w1, b1, w2, b2, w3, b3 = params
    B = x.shape[0]
    in_dim = w1.shape[0]
    latent = w3.shape[1]
    lat_pad = _round_up(max(latent, 128), 128)   # lane-dense output width

    # Flatten NCHW -> (B, C*H*W), C-major (== torch.flatten(x, start_dim=1)).
    # Keep f32: the bf16 cast happens inside the kernel (single HBM read of x).
    x_flat = x.reshape(B, -1)

    tb = _choose_tile_b(B, tile_b)
    Bp = _round_up(B, tb)
    if Bp != B:
        x_flat = jnp.pad(x_flat, ((0, Bp - B), (0, 0)))

    # Weights in bf16 (MXU-native, half the HBM bytes); biases in f32.
    w1b = w1.astype(jnp.bfloat16)
    w2b = w2.astype(jnp.bfloat16)
    w3b = jnp.pad(w3, ((0, 0), (0, lat_pad - latent))).astype(jnp.bfloat16)
    b1f = b1.astype(jnp.float32)
    b2f = b2.astype(jnp.float32)
    b3f = jnp.pad(b3.astype(jnp.float32), ((0, 0), (0, lat_pad - latent)))

    grid = (Bp // tb,)

    flops = 2 * Bp * (in_dim * 512 + 512 * 256 + 256 * lat_pad)
    transcendentals = Bp * (512 + 256 + lat_pad)
    bytes_accessed = (
        Bp * in_dim * 4                                  # x read (f32)
        + (w1b.size + w2b.size + w3b.size) * 2           # bf16 weights
        + (b1f.size + b2f.size + b3f.size) * 4           # f32 biases
        + Bp * lat_pad * 2                               # bf16 output
    )

    out = pl.pallas_call(
        fc_encoder_kernel,
        out_shape=jax.ShapeDtypeStruct((Bp, lat_pad), jnp.bfloat16),
        grid=grid,
        in_specs=[
            pl.BlockSpec((tb, in_dim), lambda i: (i, 0)),   # streamed per tile
            pl.BlockSpec(w1b.shape, lambda i: (0, 0)),      # VMEM-resident
            pl.BlockSpec(b1f.shape, lambda i: (0, 0)),
            pl.BlockSpec(w2b.shape, lambda i: (0, 0)),
            pl.BlockSpec(b2f.shape, lambda i: (0, 0)),
            pl.BlockSpec(w3b.shape, lambda i: (0, 0)),
            pl.BlockSpec(b3f.shape, lambda i: (0, 0)),
        ],
        out_specs=pl.BlockSpec((tb, lat_pad), lambda i: (i, 0)),
        compiler_params=pltpu.CompilerParams(
            # Megacore split of the batch grid on v7x (helps when grid >= 2).
            dimension_semantics=("parallel",),
            # 32 MiB is safe on every generation (v7x: 64 MiB physical VMEM);
            # ~12 MB working set at tb=512 leaves ample headroom.
            vmem_limit_bytes=32 * 1024 * 1024,
        ),
        cost_estimate=pl.CostEstimate(
            flops=flops,
            transcendentals=transcendentals,
            bytes_accessed=bytes_accessed,
        ),
    )(x_flat, w1b, b1f, w2b, b2f, w3b, b3f)

    # Strip batch padding / latent lane padding; return f32 like the reference.
    return out[:B, :latent].astype(jnp.float32)
    # TODO(synk): for repeated tiny-batch calls, keep the ~1.4 MB of weights
    # VMEM-resident across invocations (cross-call VMEM future, P10) instead
    # of re-DMAing them every call; out of scope for a single-call kernel.


def init_params(key, in_dim, latent_dim):
    """Deterministic init mimicking nn.Linear's U(-1/sqrt(fan_in), 1/sqrt(fan_in))."""
    dims = [(in_dim, 512), (512, 256), (256, latent_dim)]
    params = []
    for i, (din, dout) in enumerate(dims):
        kw, kb = jax.random.split(jax.random.fold_in(key, i))
        bound = 1.0 / (din ** 0.5)
        w = jax.random.uniform(kw, (din, dout), jnp.float32, -bound, bound)
        b = jax.random.uniform(kb, (1, dout), jnp.float32, -bound, bound)
        params += [w, b]
    return tuple(params)


def fc_encoder_ref(x, params):
    """Pure-JAX f32 reference matching the PyTorch module."""
    w1, b1, w2, b2, w3, b3 = params
    out = x.reshape(x.shape[0], -1)
    out = jax.nn.silu(out @ w1 + b1)
    out = jax.nn.silu(out @ w2 + b2)
    return jax.nn.silu(out @ w3 + b3)


if __name__ == "__main__":
    # Module config: FCEncoder(latent_dim=32, shape=16, ch=4) -> in_dim = 4*16*16 = 1024
    B, CH, SHAPE, LATENT = 2, 4, 16, 32
    in_dim = CH * SHAPE * SHAPE

    key = jax.random.PRNGKey(0)
    kx, kp = jax.random.split(key)
    x = jax.random.normal(kx, (B, CH, SHAPE, SHAPE), dtype=jnp.float32)
    params = init_params(kp, in_dim, LATENT)

    out = fc_encoder(x, params)
    out = jax.block_until_ready(out)

    ref = fc_encoder_ref(x, params)
    assert out.shape == (B, LATENT)
    # bf16 weights/activations on the MXU (f32 accumulation) + bf16 SiLU
    # epilogue -> loosened tolerance vs the f32 reference.
    assert jnp.allclose(out, ref, atol=5e-2, rtol=5e-2), (
        float(jnp.max(jnp.abs(out - ref))))

    print("KERNEL_OK")
</pallas_src>

<mosaic_0001>
module attributes {stable_mosaic.version = 11 : i64} {
  func.func @fc_encoder_kernel(%arg0: i32, %arg1: memref<16x1024xf32, #tpu.memory_space<vmem>>, %arg2: memref<1024x512xbf16, #tpu.memory_space<vmem>>, %arg3: memref<1x512xf32, #tpu.memory_space<vmem>>, %arg4: memref<512x256xbf16, #tpu.memory_space<vmem>>, %arg5: memref<1x256xf32, #tpu.memory_space<vmem>>, %arg6: memref<256x128xbf16, #tpu.memory_space<vmem>>, %arg7: memref<1x128xf32, #tpu.memory_space<vmem>>, %arg8: memref<16x128xbf16, #tpu.memory_space<vmem>>) attributes {dimension_semantics = [#tpu.dimension_semantics<parallel>], iteration_bounds = array<i64: 1>, scalar_prefetch = 0 : i64, scratch_operands = 0 : i64, tpu.core_type = #tpu.core_type<tc>, window_params = [{transform_indices = @transform_0, window_bounds = array<i64: 16, 1024>}, {pipeline_mode = #tpu.pipeline_mode<synchronous>, transform_indices = @transform_1, window_bounds = array<i64: 1024, 512>}, {pipeline_mode = #tpu.pipeline_mode<synchronous>, transform_indices = @transform_2, window_bounds = array<i64: 1, 512>}, {pipeline_mode = #tpu.pipeline_mode<synchronous>, transform_indices = @transform_3, window_bounds = array<i64: 512, 256>}, {pipeline_mode = #tpu.pipeline_mode<synchronous>, transform_indices = @transform_4, window_bounds = array<i64: 1, 256>}, {pipeline_mode = #tpu.pipeline_mode<synchronous>, transform_indices = @transform_5, window_bounds = array<i64: 256, 128>}, {pipeline_mode = #tpu.pipeline_mode<synchronous>, transform_indices = @transform_6, window_bounds = array<i64: 1, 128>}, {transform_indices = @transform_7, window_bounds = array<i64: 16, 128>}]} {
    %c0 = arith.constant 0 : index
    %c0_0 = arith.constant 0 : index
    %0 = vector.load %arg1[%c0, %c0_0] : memref<16x1024xf32, #tpu.memory_space<vmem>>, vector<16x1024xf32>
    %1 = arith.truncf %0 : vector<16x1024xf32> to vector<16x1024xbf16>
    %c0_1 = arith.constant 0 : index
    %c0_2 = arith.constant 0 : index
    %2 = vector.load %arg2[%c0_1, %c0_2] : memref<1024x512xbf16, #tpu.memory_space<vmem>>, vector<1024x512xbf16>
    %cst = arith.constant dense<0.000000e+00> : vector<16x512xf32>
    %3 = tpu.matmul %1, %2, %cst {dimension_numbers = #tpu.dot_dimension_numbers<[1], [0], [0], [1], [0, 0, 1, 1], [], []>} : vector<16x1024xbf16>, vector<1024x512xbf16>, vector<16x512xf32> -> vector<16x512xf32>
    %c0_3 = arith.constant 0 : index
    %c0_4 = arith.constant 0 : index
    %4 = vector.load %arg3[%c0_3, %c0_4] : memref<1x512xf32, #tpu.memory_space<vmem>>, vector<1x512xf32>
    %5 = vector.broadcast %4 : vector<1x512xf32> to vector<16x512xf32>
    %6 = arith.addf %3, %5 : vector<16x512xf32>
    %7 = arith.truncf %6 : vector<16x512xf32> to vector<16x512xbf16>
    %cst_5 = arith.constant 5.000000e-01 : bf16
    %8 = vector.broadcast %cst_5 : bf16 to vector<16x512xbf16>
    %9 = arith.mulf %7, %8 : vector<16x512xbf16>
    %10 = math.tanh %9 : vector<16x512xbf16>
    %cst_6 = arith.constant 5.000000e-01 : bf16
    %11 = vector.broadcast %cst_6 : bf16 to vector<16x512xbf16>
    %12 = arith.mulf %10, %11 : vector<16x512xbf16>
    %cst_7 = arith.constant 5.000000e-01 : bf16
    %13 = vector.broadcast %cst_7 : bf16 to vector<16x512xbf16>
    %14 = arith.addf %12, %13 : vector<16x512xbf16>
    %15 = arith.mulf %7, %14 : vector<16x512xbf16>
    %c0_8 = arith.constant 0 : index
    %c0_9 = arith.constant 0 : index
    %16 = vector.load %arg4[%c0_8, %c0_9] : memref<512x256xbf16, #tpu.memory_space<vmem>>, vector<512x256xbf16>
    %cst_10 = arith.constant dense<0.000000e+00> : vector<16x256xf32>
    %17 = tpu.matmul %15, %16, %cst_10 {dimension_numbers = #tpu.dot_dimension_numbers<[1], [0], [0], [1], [0, 0, 1, 1], [], []>} : vector<16x512xbf16>, vector<512x256xbf16>, vector<16x256xf32> -> vector<16x256xf32>
    %c0_11 = arith.constant 0 : index
    %c0_12 = arith.constant 0 : index
    %18 = vector.load %arg5[%c0_11, %c0_12] : memref<1x256xf32, #tpu.memory_space<vmem>>, vector<1x256xf32>
    %19 = vector.broadcast %18 : vector<1x256xf32> to vector<16x256xf32>
    %20 = arith.addf %17, %19 : vector<16x256xf32>
    %21 = arith.truncf %20 : vector<16x256xf32> to vector<16x256xbf16>
    %cst_13 = arith.constant 5.000000e-01 : bf16
    %22 = vector.broadcast %cst_13 : bf16 to vector<16x256xbf16>
    %23 = arith.mulf %21, %22 : vector<16x256xbf16>
    %24 = math.tanh %23 : vector<16x256xbf16>
    %cst_14 = arith.constant 5.000000e-01 : bf16
    %25 = vector.broadcast %cst_14 : bf16 to vector<16x256xbf16>
    %26 = arith.mulf %24, %25 : vector<16x256xbf16>
    %cst_15 = arith.constant 5.000000e-01 : bf16
    %27 = vector.broadcast %cst_15 : bf16 to vector<16x256xbf16>
    %28 = arith.addf %26, %27 : vector<16x256xbf16>
    %29 = arith.mulf %21, %28 : vector<16x256xbf16>
    %c0_16 = arith.constant 0 : index
    %c0_17 = arith.constant 0 : index
    %30 = vector.load %arg6[%c0_16, %c0_17] : memref<256x128xbf16, #tpu.memory_space<vmem>>, vector<256x128xbf16>
    %cst_18 = arith.constant dense<0.000000e+00> : vector<16x128xf32>
    %31 = tpu.matmul %29, %30, %cst_18 {dimension_numbers = #tpu.dot_dimension_numbers<[1], [0], [0], [1], [0, 0, 1, 1], [], []>} : vector<16x256xbf16>, vector<256x128xbf16>, vector<16x128xf32> -> vector<16x128xf32>
    %c0_19 = arith.constant 0 : index
    %c0_20 = arith.constant 0 : index
    %32 = vector.load %arg7[%c0_19, %c0_20] : memref<1x128xf32, #tpu.memory_space<vmem>>, vector<1x128xf32>
    %33 = vector.broadcast %32 : vector<1x128xf32> to vector<16x128xf32>
    %34 = arith.addf %31, %33 : vector<16x128xf32>
    %35 = arith.truncf %34 : vector<16x128xf32> to vector<16x128xbf16>
    %cst_21 = arith.constant 5.000000e-01 : bf16
    %36 = vector.broadcast %cst_21 : bf16 to vector<16x128xbf16>
    %37 = arith.mulf %35, %36 : vector<16x128xbf16>
    %38 = math.tanh %37 : vector<16x128xbf16>
    %cst_22 = arith.constant 5.000000e-01 : bf16
    %39 = vector.broadcast %cst_22 : bf16 to vector<16x128xbf16>
    %40 = arith.mulf %38, %39 : vector<16x128xbf16>
    %cst_23 = arith.constant 5.000000e-01 : bf16
    %41 = vector.broadcast %cst_23 : bf16 to vector<16x128xbf16>
    %42 = arith.addf %40, %41 : vector<16x128xbf16>
    %43 = arith.mulf %35, %42 : vector<16x128xbf16>
    %c0_24 = arith.constant 0 : index
    %c0_25 = arith.constant 0 : index
    %44 = vector.load %arg8[%c0_24, %c0_25] : memref<16x128xbf16, #tpu.memory_space<vmem>>, vector<16x128xbf16>
    tpu.vector_store %arg8[%c0_24, %c0_25], %43 {strides = array<i32>} : memref<16x128xbf16, #tpu.memory_space<vmem>>, vector<16x128xbf16>,
    return
  }
  func.func @transform_0(%arg0: i32) -> (i32, i32) {
    %c0_i32 = arith.constant 0 : i32
    %c0_i32_0 = arith.constant 0 : i32
    return %arg0, %c0_i32 : i32, i32
  }
  func.func @transform_1(%arg0: i32) -> (i32, i32) {
    %c0_i32 = arith.constant 0 : i32
    %c0_i32_0 = arith.constant 0 : i32
    %c0_i32_1 = arith.constant 0 : i32
    return %c0_i32, %c0_i32_0 : i32, i32
  }
  func.func @transform_2(%arg0: i32) -> (i32, i32) {
    %c0_i32 = arith.constant 0 : i32
    %c0_i32_0 = arith.constant 0 : i32
    %c0_i32_1 = arith.constant 0 : i32
    return %c0_i32, %c0_i32_0 : i32, i32
  }
  func.func @transform_3(%arg0: i32) -> (i32, i32) {
    %c0_i32 = arith.constant 0 : i32
    %c0_i32_0 = arith.constant 0 : i32
    %c0_i32_1 = arith.constant 0 : i32
    return %c0_i32, %c0_i32_0 : i32, i32
  }
  func.func @transform_4(%arg0: i32) -> (i32, i32) {
    %c0_i32 = arith.constant 0 : i32
    %c0_i32_0 = arith.constant 0 : i32
    %c0_i32_1 = arith.constant 0 : i32
    return %c0_i32, %c0_i32_0 : i32, i32
  }
  func.func @transform_5(%arg0: i32) -> (i32, i32) {
    %c0_i32 = arith.constant 0 : i32
    %c0_i32_0 = arith.constant 0 : i32
    %c0_i32_1 = arith.constant 0 : i32
    return %c0_i32, %c0_i32_0 : i32, i32
  }
  func.func @transform_6(%arg0: i32) -> (i32, i32) {
    %c0_i32 = arith.constant 0 : i32
    %c0_i32_0 = arith.constant 0 : i32
    %c0_i32_1 = arith.constant 0 : i32
    return %c0_i32, %c0_i32_0 : i32, i32
  }
  func.func @transform_7(%arg0: i32) -> (i32, i32) {
    %c0_i32 = arith.constant 0 : i32
    %c0_i32_0 = arith.constant 0 : i32
    return %arg0, %c0_i32 : i32, i32
  }
}

</mosaic_0001>

<llo_original>
// kernel: tpu_custom_call.1
$region0: #{tpu_custom_call.1}
  #allocation0 [shape = 'u32[]', space=smem, size = 0x4, offset = 0x4, fixed_abs, tag = 'smem constant byte address 0x4 - core index']
  #allocation1 [shape = 'u32[144,128]{1,0:T(1,128)}', space=vmem, size = 0x12000, scoped, tag = 'internal scratch']
  %s0 = inlined_call_operand.hbm [shape: f32[16,1024], index: 0, kind: input, shape index: {}]
  %s1 = inlined_call_operand.hbm [shape: bf16[1024,512], index: 1, kind: input, shape index: {}]
  %s2 = inlined_call_operand.hbm [shape: f32[1,512], index: 2, kind: input, shape index: {}]
  %s3 = inlined_call_operand.hbm [shape: bf16[512,256], index: 3, kind: input, shape index: {}]
  %s4 = inlined_call_operand.vmem [shape: f32[1,256], index: 4, kind: input, shape index: {}]
  %s5 = inlined_call_operand.hbm [shape: bf16[256,128], index: 5, kind: input, shape index: {}]
  %s6 = inlined_call_operand.vmem [shape: f32[1,128], index: 6, kind: input, shape index: {}]
  %s7 = inlined_call_operand.hbm [shape: bf16[16,128], index: 7, kind: output, shape index: {}]
  %s8 = sld [smem:[#allocation0]]
  $region58: #{tpu_custom_call.1} parent=0
    _
  %s10 = ssub.s32 1, %s8
  %s11 = scalar_select 0, %s10, %s8
  $region1: #{tpu_custom_call.1} parent=0
    #allocation2 [shape = 'u8[65536]{0}', space=vmem, size = 0x10000, scoped, tag = 'input window, operand 0, single buffered']
    #allocation3 [shape = 's32[1]{0}', space=sflag, size = 0x4, scoped, tag = 'scoped memory for tpu_custom_call.1']
    #allocation4 [shape = 's32[1]{0}', space=sflag, size = 0x4, scoped, tag = 'scoped memory for tpu_custom_call.1']
    #allocation5 [shape = 'u8[1048576]{0}', space=vmem, size = 0x100000, scoped, tag = 'input window, operand 1, single buffered']
    #allocation6 [shape = 's32[1]{0}', space=sflag, size = 0x4, scoped, tag = 'scoped memory for tpu_custom_call.1']
    #allocation7 [shape = 'u8[2048]{0}', space=vmem, size = 0x800, scoped, tag = 'input window, operand 2, single buffered']
    #allocation8 [shape = 'u8[262144]{0}', space=vmem, size = 0x40000, scoped, tag = 'input window, operand 3, single buffered']
    #allocation9 [shape = 's32[1]{0}', space=sflag, size = 0x4, scoped, tag = 'scoped memory for tpu_custom_call.1']
    #allocation10 [shape = 'u8[65536]{0}', space=vmem, size = 0x10000, scoped, tag = 'input window, operand 5, single buffered']
    #allocation11 [shape = 'u8[4096]{0}', space=vmem, size = 0x1000, scoped, tag = 'output window, operand 0, single buffered']
    %12 = vsyncpa [#allocation3], 0
    %13 = vsyncpa [#allocation6], 0
    %14 = vsyncpa [#allocation9], 0
    %15 = vsyncpa [#allocation4], 0
    // Predicated region
    $region2: #{tpu_custom_call.1} parent=1 // pred_check
      _
    $region3: #{tpu_custom_call.1} parent=1 // pred_check_branch
      %17 = sbr.rel (0) target = $region5
    $region4: #{tpu_custom_call.1} parent=1 // pred_region
      %s19 = ssub.s32 2048, 2048
      %20 = vsyncadd [#allocation3], %s19
      %s21 = sshll.u32 [#allocation2], 4
      %s22 = int_to_ptr.vmem [resolvable:$true] %s21
      %27 = dma.hbm_to_vmem [thread:$0]  %s0, 2048, %s22, [#allocation3], 1024, 1024, 64
    $region5: #{tpu_custom_call.1} parent=1 // pred_fallthru
      _
    // Predicated region
    $region6: #{tpu_custom_call.1} parent=1 // pred_check
      _
    $region7: #{tpu_custom_call.1} parent=1 // pred_check_branch
      %29 = sbr.rel (0) target = $region9
    $region8: #{tpu_custom_call.1} parent=1 // pred_region
      %s31 = ssub.s32 32768, 32768
      %32 = vsyncadd [#allocation6], %s31
      %s33 = sshll.u32 [#allocation5], 4
      %s34 = int_to_ptr.vmem [resolvable:$true] %s33
      %39 = dma.hbm_to_vmem [thread:$0]  %s1, 32768, %s34, [#allocation6], 256, 256, 16
    $region9: #{tpu_custom_call.1} parent=1 // pred_fallthru
      _
    // Predicated region
    $region10: #{tpu_custom_call.1} parent=1 // pred_check
      _
    $region11: #{tpu_custom_call.1} parent=1 // pred_check_branch
      %41 = sbr.rel (0) target = $region13
    $region12: #{tpu_custom_call.1} parent=1 // pred_region
      %s43 = ssub.s32 64, 64
      %44 = vsyncadd [#allocation6], %s43
      %s46 = sshll.u32 [#allocation7], 4
      %s47 = int_to_ptr.vmem [resolvable:$true] %s46
      %49 = dma.hbm_to_vmem [thread:$0]  %s2, 64, %s47, [#allocation6]
    $region13: #{tpu_custom_call.1} parent=1 // pred_fallthru
      _
    // Predicated region
    $region14: #{tpu_custom_call.1} parent=1 // pred_check
      _
    $region15: #{tpu_custom_call.1} parent=1 // pred_check_branch
      %51 = sbr.rel (0) target = $region17
    $region16: #{tpu_custom_call.1} parent=1 // pred_region
      %s53 = ssub.s32 8192, 8192
      %54 = vsyncadd [#allocation9], %s53
      %s55 = sshll.u32 [#allocation8], 4
      %s56 = int_to_ptr.vmem [resolvable:$true] %s55
      %61 = dma.hbm_to_vmem [thread:$0]  %s3, 8192, %s56, [#allocation9], 128, 128, 8
    $region17: #{tpu_custom_call.1} parent=1 // pred_fallthru
      _
    // Predicated region
    $region18: #{tpu_custom_call.1} parent=1 // pred_check
      _
    $region19: #{tpu_custom_call.1} parent=1 // pred_check_branch
      %63 = sbr.rel (0) target = $region21
    $region20: #{tpu_custom_call.1} parent=1 // pred_region
      _
    $region21: #{tpu_custom_call.1} parent=1 // pred_fallthru
      _
    // Predicated region
    $region22: #{tpu_custom_call.1} parent=1 // pred_check
      _
    $region23: #{tpu_custom_call.1} parent=1 // pred_check_branch
      %65 = sbr.rel (0) target = $region25
    $region24: #{tpu_custom_call.1} parent=1 // pred_region
      %s67 = ssub.s32 2048, 2048
      %68 = vsyncadd [#allocation9], %s67
      %s69 = sshll.u32 [#allocation10], 4
      %s70 = int_to_ptr.vmem [resolvable:$true] %s69
      %75 = dma.hbm_to_vmem [thread:$0]  %s5, 2048, %s70, [#allocation9], 64, 64, 4
    $region25: #{tpu_custom_call.1} parent=1 // pred_fallthru
      _
    // Predicated region
    $region26: #{tpu_custom_call.1} parent=1 // pred_check
      _
    $region27: #{tpu_custom_call.1} parent=1 // pred_check_branch
      %77 = sbr.rel (0) target = $region29
    $region28: #{tpu_custom_call.1} parent=1 // pred_region
      _
    $region29: #{tpu_custom_call.1} parent=1 // pred_fallthru
      _
    // Predicated region
    $region30: #{tpu_custom_call.1} parent=1 // pred_check
      _
    $region31: #{tpu_custom_call.1} parent=1 // pred_check_branch
      %79 = sbr.rel (0) target = $region33
    $region32: #{tpu_custom_call.1} parent=1 // pred_region
      %80 = dma.done [#allocation3], 2048
    $region33: #{tpu_custom_call.1} parent=1 // pred_fallthru
      _
    // Predicated region
    $region34: #{tpu_custom_call.1} parent=1 // pred_check
      _
    $region35: #{tpu_custom_call.1} parent=1 // pred_check_branch
      %82 = sbr.rel (0) target = $region37
    $region36: #{tpu_custom_call.1} parent=1 // pred_region
      %83 = dma.done [#allocation6], 32768
    $region37: #{tpu_custom_call.1} parent=1 // pred_fallthru
      _
    // Predicated region
    $region38: #{tpu_custom_call.1} parent=1 // pred_check
      _
    $region39: #{tpu_custom_call.1} parent=1 // pred_check_branch
      %85 = sbr.rel (0) target = $region41
    $region40: #{tpu_custom_call.1} parent=1 // pred_region
      %86 = dma.done [#allocation6], 64
    $region41: #{tpu_custom_call.1} parent=1 // pred_fallthru
      _
    // Predicated region
    $region42: #{tpu_custom_call.1} parent=1 // pred_check
      _
    $region43: #{tpu_custom_call.1} parent=1 // pred_check_branch
      %88 = sbr.rel (0) target = $region45
    $region44: #{tpu_custom_call.1} parent=1 // pred_region
      %89 = dma.done [#allocation9], 8192
    $region45: #{tpu_custom_call.1} parent=1 // pred_fallthru
      _
    // Predicated region
    $region46: #{tpu_custom_call.1} parent=1 // pred_check
      _
    $region47: #{tpu_custom_call.1} parent=1 // pred_check_branch
      %91 = sbr.rel (0) target = $region49
    $region48: #{tpu_custom_call.1} parent=1 // pred_region
      %92 = dma.done [#allocation9], 2048
    $region49: #{tpu_custom_call.1} parent=1 // pred_fallthru
      _
    %v95 = vld [vmem:[#allocation2] sm:$0xff]
    %v96 = vld [vmem:[#allocation2 + $0x8] sm:$0xff]
    %v97 = vld [vmem:[#allocation2 + $0x10] sm:$0xff]
    %v98 = vld [vmem:[#allocation2 + $0x18] sm:$0xff]
    %v99 = vld [vmem:[#allocation2 + $0x20] sm:$0xff]
    %v100 = vld [vmem:[#allocation2 + $0x28] sm:$0xff]
    %v101 = vld [vmem:[#allocation2 + $0x30] sm:$0xff]
    %v102 = vld [vmem:[#allocation2 + $0x38] sm:$0xff]
    %v103 = vld [vmem:[#allocation2 + $0x40] sm:$0xff]
    %v104 = vld [vmem:[#allocation2 + $0x48] sm:$0xff]
    %v105 = vld [vmem:[#allocation2 + $0x50] sm:$0xff]
    %v106 = vld [vmem:[#allocation2 + $0x58] sm:$0xff]
    %v107 = vld [vmem:[#allocation2 + $0x60] sm:$0xff]
    %v108 = vld [vmem:[#allocation2 + $0x68] sm:$0xff]
    %v109 = vld [vmem:[#allocation2 + $0x70] sm:$0xff]
    %v110 = vld [vmem:[#allocation2 + $0x78] sm:$0xff]
    %v111 = vpack.c.bf16 %v103, %v95
    %v112 = vpack.c.bf16 %v104, %v96
    %v113 = vpack.c.bf16 %v105, %v97
    %v114 = vpack.c.bf16 %v106, %v98
    %v115 = vpack.c.bf16 %v107, %v99
    %v116 = vpack.c.bf16 %v108, %v100
    %v117 = vpack.c.bf16 %v109, %v101
    %v118 = vpack.c.bf16 %v110, %v102
    %v119 = vld [vmem:[#allocation5] sm:$0xff]
    %v120 = vld [vmem:[#allocation5 + $0x8] sm:$0xff]
    %v121 = vld [vmem:[#allocation5 + $0x10] sm:$0xff]
    %v122 = vld [vmem:[#allocation5 + $0x18] sm:$0xff]
    %v123 = vld [vmem:[#allocation5 + $0x20] sm:$0xff]
    %v124 = vld [vmem:[#allocation5 + $0x28] sm:$0xff]
    %v125 = vld [vmem:[#allocation5 + $0x30] sm:$0xff]
    %v126 = vld [vmem:[#allocation5 + $0x38] sm:$0xff]
    %v127 = vld [vmem:[#allocation5 + $0x40] sm:$0xff]
    %v128 = vld [vmem:[#allocation5 + $0x48] sm:$0xff]
    %v129 = vld [vmem:[#allocation5 + $0x50] sm:$0xff]
    %v130 = vld [vmem:[#allocation5 + $0x58] sm:$0xff]
    %v131 = vld [vmem:[#allocation5 + $0x60] sm:$0xff]
    %v132 = vld [vmem:[#allocation5 + $0x68] sm:$0xff]
    %v133 = vld [vmem:[#allocation5 + $0x70] sm:$0xff]
    %v134 = vld [vmem:[#allocation5 + $0x78] sm:$0xff]
    %v135 = vld [vmem:[#allocation5 + $0x80] sm:$0xff]
    %v136 = vld [vmem:[#allocation5 + $0x88] sm:$0xff]
    %v137 = vld [vmem:[#allocation5 + $0x90] sm:$0xff]
    %v138 = vld [vmem:[#allocation5 + $0x98] sm:$0xff]
    %v139 = vld [vmem:[#allocation5 + $0xa0] sm:$0xff]
    %v140 = vld [vmem:[#allocation5 + $0xa8] sm:$0xff]
    %v141 = vld [vmem:[#allocation5 + $0xb0] sm:$0xff]
    %v142 = vld [vmem:[#allocation5 + $0xb8] sm:$0xff]
    %v143 = vld [vmem:[#allocation5 + $0xc0] sm:$0xff]
    %v144 = vld [vmem:[#allocation5 + $0xc8] sm:$0xff]
    %v145 = vld [vmem:[#allocation5 + $0xd0] sm:$0xff]
    %v146 = vld [vmem:[#allocation5 + $0xd8] sm:$0xff]
    %v147 = vld [vmem:[#allocation5 + $0xe0] sm:$0xff]
    %v148 = vld [vmem:[#allocation5 + $0xe8] sm:$0xff]
    %v149 = vld [vmem:[#allocation5 + $0xf0] sm:$0xff]
    %v150 = vld [vmem:[#allocation5 + $0xf8] sm:$0xff]
    %v151 = vld [vmem:[#allocation5 + $0x100] sm:$0xff]
    %v152 = vld [vmem:[#allocation5 + $0x108] sm:$0xff]
    %v153 = vld [vmem:[#allocation5 + $0x110] sm:$0xff]
    %v154 = vld [vmem:[#allocation5 + $0x118] sm:$0xff]
    %v155 = vld [vmem:[#allocation5 + $0x120] sm:$0xff]
    %v156 = vld [vmem:[#allocation5 + $0x128] sm:$0xff]
    %v157 = vld [vmem:[#allocation5 + $0x130] sm:$0xff]
    %v158 = vld [vmem:[#allocation5 + $0x138] sm:$0xff]
    %v159 = vld [vmem:[#allocation5 + $0x140] sm:$0xff]
    %v160 = vld [vmem:[#allocation5 + $0x148] sm:$0xff]
    %v161 = vld [vmem:[#allocation5 + $0x150] sm:$0xff]
    %v162 = vld [vmem:[#allocation5 + $0x158] sm:$0xff]
    %v163 = vld [vmem:[#allocation5 + $0x160] sm:$0xff]
    %v164 = vld [vmem:[#allocation5 + $0x168] sm:$0xff]
    %v165 = vld [vmem:[#allocation5 + $0x170] sm:$0xff]
    %v166 = vld [vmem:[#allocation5 + $0x178] sm:$0xff]
    %v167 = vld [vmem:[#allocation5 + $0x180] sm:$0xff]
    %v168 = vld [vmem:[#allocation5 + $0x188] sm:$0xff]
    %v169 = vld [vmem:[#allocation5 + $0x190] sm:$0xff]
    %v170 = vld [vmem:[#allocation5 + $0x198] sm:$0xff]
    %v171 = vld [vmem:[#allocation5 + $0x1a0] sm:$0xff]
    %v172 = vld [vmem:[#allocation5 + $0x1a8] sm:$0xff]
    %v173 = vld [vmem:[#allocation5 + $0x1b0] sm:$0xff]
    %v174 = vld [vmem:[#allocation5 + $0x1b8] sm:$0xff]
    %v175 = vld [vmem:[#allocation5 + $0x1c0] sm:$0xff]
    %v176 = vld [vmem:[#allocation5 + $0x1c8] sm:$0xff]
    %v177 = vld [vmem:[#allocation5 + $0x1d0] sm:$0xff]
    %v178 = vld [vmem:[#allocation5 + $0x1d8] sm:$0xff]
    %v179 = vld [vmem:[#allocation5 + $0x1e0] sm:$0xff]
    %v180 = vld [vmem:[#allocation5 + $0x1e8] sm:$0xff]
    %v181 = vld [vmem:[#allocation5 + $0x1f0] sm:$0xff]
    %v182 = vld [vmem:[#allocation5 + $0x1f8] sm:$0xff]
    %v183 = vld [vmem:[#allocation5 + $0x200] sm:$0xff]
    %v184 = vld [vmem:[#allocation5 + $0x208] sm:$0xff]
    %v185 = vld [vmem:[#allocation5 + $0x210] sm:$0xff]
    %v186 = vld [vmem:[#allocation5 + $0x218] sm:$0xff]
    %v187 = vld [vmem:[#allocation5 + $0x220] sm:$0xff]
    %v188 = vld [vmem:[#allocation5 + $0x228] sm:$0xff]
    %v189 = vld [vmem:[#allocation5 + $0x230] sm:$0xff]
    %v190 = vld [vmem:[#allocation5 + $0x238] sm:$0xff]
    %v191 = vld [vmem:[#allocation5 + $0x240] sm:$0xff]
    %v192 = vld [vmem:[#allocation5 + $0x248] sm:$0xff]
    %v193 = vld [vmem:[#allocation5 + $0x250] sm:$0xff]
    %v194 = vld [vmem:[#allocation5 + $0x258] sm:$0xff]
    %v195 = vld [vmem:[#allocation5 + $0x260] sm:$0xff]
    %v196 = vld [vmem:[#allocation5 + $0x268] sm:$0xff]
    %v197 = vld [vmem:[#allocation5 + $0x270] sm:$0xff]
    %v198 = vld [vmem:[#allocation5 + $0x278] sm:$0xff]
    %v199 = vld [vmem:[#allocation5 + $0x280] sm:$0xff]
    %v200 = vld [vmem:[#allocation5 + $0x288] sm:$0xff]
    %v201 = vld [vmem:[#allocation5 + $0x290] sm:$0xff]
    %v202 = vld [vmem:[#allocation5 + $0x298] sm:$0xff]
    %v203 = vld [vmem:[#allocation5 + $0x2a0] sm:$0xff]
    %v204 = vld [vmem:[#allocation5 + $0x2a8] sm:$0xff]
    %v205 = vld [vmem:[#allocation5 + $0x2b0] sm:$0xff]
    %v206 = vld [vmem:[#allocation5 + $0x2b8] sm:$0xff]
    %v207 = vld [vmem:[#allocation5 + $0x2c0] sm:$0xff]
    %v208 = vld [vmem:[#allocation5 + $0x2c8] sm:$0xff]
    %v209 = vld [vmem:[#allocation5 + $0x2d0] sm:$0xff]
    %v210 = vld [vmem:[#allocation5 + $0x2d8] sm:$0xff]
    %v211 = vld [vmem:[#allocation5 + $0x2e0] sm:$0xff]
    %v212 = vld [vmem:[#allocation5 + $0x2e8] sm:$0xff]
    %v213 = vld [vmem:[#allocation5 + $0x2f0] sm:$0xff]
    %v214 = vld [vmem:[#allocation5 + $0x2f8] sm:$0xff]
    %v215 = vld [vmem:[#allocation5 + $0x300] sm:$0xff]
    %v216 = vld [vmem:[#allocation5 + $0x308] sm:$0xff]
    %v217 = vld [vmem:[#allocation5 + $0x310] sm:$0xff]
    %v218 = vld [vmem:[#allocation5 + $0x318] sm:$0xff]
    %v219 = vld [vmem:[#allocation5 + $0x320] sm:$0xff]
    %v220 = vld [vmem:[#allocation5 + $0x328] sm:$0xff]
    %v221 = vld [vmem:[#allocation5 + $0x330] sm:$0xff]
    %v222 = vld [vmem:[#allocation5 + $0x338] sm:$0xff]
    %v223 = vld [vmem:[#allocation5 + $0x340] sm:$0xff]
    %v224 = vld [vmem:[#allocation5 + $0x348] sm:$0xff]
    %v225 = vld [vmem:[#allocation5 + $0x350] sm:$0xff]
    %v226 = vld [vmem:[#allocation5 + $0x358] sm:$0xff]
    %v227 = vld [vmem:[#allocation5 + $0x360] sm:$0xff]
    %v228 = vld [vmem:[#allocation5 + $0x368] sm:$0xff]
    %v229 = vld [vmem:[#allocation5 + $0x370] sm:$0xff]
    %v230 = vld [vmem:[#allocation5 + $0x378] sm:$0xff]
    %v231 = vld [vmem:[#allocation5 + $0x380] sm:$0xff]
    %v232 = vld [vmem:[#allocation5 + $0x388] sm:$0xff]
    %v233 = vld [vmem:[#allocation5 + $0x390] sm:$0xff]
    %v234 = vld [vmem:[#allocation5 + $0x398] sm:$0xff]
    %v235 = vld [vmem:[#allocation5 + $0x3a0] sm:$0xff]
    %v236 = vld [vmem:[#allocation5 + $0x3a8] sm:$0xff]
    %v237 = vld [vmem:[#allocation5 + $0x3b0] sm:$0xff]
    %v238 = vld [vmem:[#allocation5 + $0x3b8] sm:$0xff]
    %v239 = vld [vmem:[#allocation5 + $0x3c0] sm:$0xff]
    %v240 = vld [vmem:[#allocation5 + $0x3c8] sm:$0xff]
    %v241 = vld [vmem:[#allocation5 + $0x3d0] sm:$0xff]
    %v242 = vld [vmem:[#allocation5 + $0x3d8] sm:$0xff]
    %v243 = vld [vmem:[#allocation5 + $0x3e0] sm:$0xff]
    %v244 = vld [vmem:[#allocation5 + $0x3e8] sm:$0xff]
    %v245 = vld [vmem:[#allocation5 + $0x3f0] sm:$0xff]
    %v246 = vld [vmem:[#allocation5 + $0x3f8] sm:$0xff]
    %v247 = vld [vmem:[#allocation5 + $0x400] sm:$0xff]
    %v248 = vld [vmem:[#allocation5 + $0x408] sm:$0xff]
    %v249 = vld [vmem:[#allocation5 + $0x410] sm:$0xff]
    %v250 = vld [vmem:[#allocation5 + $0x418] sm:$0xff]
    %v251 = vld [vmem:[#allocation5 + $0x420] sm:$0xff]
    %v252 = vld [vmem:[#allocation5 + $0x428] sm:$0xff]
    %v253 = vld [vmem:[#allocation5 + $0x430] sm:$0xff]
    %v254 = vld [vmem:[#allocation5 + $0x438] sm:$0xff]
    %v255 = vld [vmem:[#allocation5 + $0x440] sm:$0xff]
    %v256 = vld [vmem:[#allocation5 + $0x448] sm:$0xff]
    %v257 = vld [vmem:[#allocation5 + $0x450] sm:$0xff]
    %v258 = vld [vmem:[#allocation5 + $0x458] sm:$0xff]
    %v259 = vld [vmem:[#allocation5 + $0x460] sm:$0xff]
    %v260 = vld [vmem:[#allocation5 + $0x468] sm:$0xff]
    %v261 = vld [vmem:[#allocation5 + $0x470] sm:$0xff]
    %v262 = vld [vmem:[#allocation5 + $0x478] sm:$0xff]
    %v263 = vld [vmem:[#allocation5 + $0x480] sm:$0xff]
    %v264 = vld [vmem:[#allocation5 + $0x488] sm:$0xff]
    %v265 = vld [vmem:[#allocation5 + $0x490] sm:$0xff]
    %v266 = vld [vmem:[#allocation5 + $0x498] sm:$0xff]
    %v267 = vld [vmem:[#allocation5 + $0x4a0] sm:$0xff]
    %v268 = vld [vmem:[#allocation5 + $0x4a8] sm:$0xff]
    %v269 = vld [vmem:[#allocation5 + $0x4b0] sm:$0xff]
    %v270 = vld [vmem:[#allocation5 + $0x4b8] sm:$0xff]
    %v271 = vld [vmem:[#allocation5 + $0x4c0] sm:$0xff]
    %v272 = vld [vmem:[#allocation5 + $0x4c8] sm:$0xff]
    %v273 = vld [vmem:[#allocation5 + $0x4d0] sm:$0xff]
    %v274 = vld [vmem:[#allocation5 + $0x4d8] sm:$0xff]
    %v275 = vld [vmem:[#allocation5 + $0x4e0] sm:$0xff]
    %v276 = vld [vmem:[#allocation5 + $0x4e8] sm:$0xff]
    %v277 = vld [vmem:[#allocation5 + $0x4f0] sm:$0xff]
    %v278 = vld [vmem:[#allocation5 + $0x4f8] sm:$0xff]
    %v279 = vld [vmem:[#allocation5 + $0x500] sm:$0xff]
    %v280 = vld [vmem:[#allocation5 + $0x508] sm:$0xff]
    %v281 = vld [vmem:[#allocation5 + $0x510] sm:$0xff]
    %v282 = vld [vmem:[#allocation5 + $0x518] sm:$0xff]
    %v283 = vld [vmem:[#allocation5 + $0x520] sm:$0xff]
    %v284 = vld [vmem:[#allocation5 + $0x528] sm:$0xff]
    %v285 = vld [vmem:[#allocation5 + $0x530] sm:$0xff]
    %v286 = vld [vmem:[#allocation5 + $0x538] sm:$0xff]
    %v287 = vld [vmem:[#allocation5 + $0x540] sm:$0xff]
    %v288 = vld [vmem:[#allocation5 + $0x548] sm:$0xff]
    %v289 = vld [vmem:[#allocation5 + $0x550] sm:$0xff]
    %v290 = vld [vmem:[#allocation5 + $0x558] sm:$0xff]
    %v291 = vld [vmem:[#allocation5 + $0x560] sm:$0xff]
    %v292 = vld [vmem:[#allocation5 + $0x568] sm:$0xff]
    %v293 = vld [vmem:[#allocation5 + $0x570] sm:$0xff]
    %v294 = vld [vmem:[#allocation5 + $0x578] sm:$0xff]
    %v295 = vld [vmem:[#allocation5 + $0x580] sm:$0xff]
    %v296 = vld [vmem:[#allocation5 + $0x588] sm:$0xff]
    %v297 = vld [vmem:[#allocation5 + $0x590] sm:$0xff]
    %v298 = vld [vmem:[#allocation5 + $0x598] sm:$0xff]
    %v299 = vld [vmem:[#allocation5 + $0x5a0] sm:$0xff]
    %v300 = vld [vmem:[#allocation5 + $0x5a8] sm:$0xff]
    %v301 = vld [vmem:[#allocation5 + $0x5b0] sm:$0xff]
    %v302 = vld [vmem:[#allocation5 + $0x5b8] sm:$0xff]
    %v303 = vld [vmem:[#allocation5 + $0x5c0] sm:$0xff]
    %v304 = vld [vmem:[#allocation5 + $0x5c8] sm:$0xff]
    %v305 = vld [vmem:[#allocation5 + $0x5d0] sm:$0xff]
    %v306 = vld [vmem:[#allocation5 + $0x5d8] sm:$0xff]
    %v307 = vld [vmem:[#allocation5 + $0x5e0] sm:$0xff]
    %v308 = vld [vmem:[#allocation5 + $0x5e8] sm:$0xff]
    %v309 = vld [vmem:[#allocation5 + $0x5f0] sm:$0xff]
    %v310 = vld [vmem:[#allocation5 + $0x5f8] sm:$0xff]
    %v311 = vld [vmem:[#allocation5 + $0x600] sm:$0xff]
    %v312 = vld [vmem:[#allocation5 + $0x608] sm:$0xff]
    %v313 = vld [vmem:[#allocation5 + $0x610] sm:$0xff]
    %v314 = vld [vmem:[#allocation5 + $0x618] sm:$0xff]
    %v315 = vld [vmem:[#allocation5 + $0x620] sm:$0xff]
    %v316 = vld [vmem:[#allocation5 + $0x628] sm:$0xff]
    %v317 = vld [vmem:[#allocation5 + $0x630] sm:$0xff]
    %v318 = vld [vmem:[#allocation5 + $0x638] sm:$0xff]
    %v319 = vld [vmem:[#allocation5 + $0x640] sm:$0xff]
    %v320 = vld [vmem:[#allocation5 + $0x648] sm:$0xff]
    %v321 = vld [vmem:[#allocation5 + $0x650] sm:$0xff]
    %v322 = vld [vmem:[#allocation5 + $0x658] sm:$0xff]
    %v323 = vld [vmem:[#allocation5 + $0x660] sm:$0xff]
    %v324 = vld [vmem:[#allocation5 + $0x668] sm:$0xff]
    %v325 = vld [vmem:[#allocation5 + $0x670] sm:$0xff]
    %v326 = vld [vmem:[#allocation5 + $0x678] sm:$0xff]
    %v327 = vld [vmem:[#allocation5 + $0x680] sm:$0xff]
    %v328 = vld [vmem:[#allocation5 + $0x688] sm:$0xff]
    %v329 = vld [vmem:[#allocation5 + $0x690] sm:$0xff]
    %v330 = vld [vmem:[#allocation5 + $0x698] sm:$0xff]
    %v331 = vld [vmem:[#allocation5 + $0x6a0] sm:$0xff]
    %v332 = vld [vmem:[#allocation5 + $0x6a8] sm:$0xff]
    %v333 = vld [vmem:[#allocation5 + $0x6b0] sm:$0xff]
    %v334 = vld [vmem:[#allocation5 + $0x6b8] sm:$0xff]
    %v335 = vld [vmem:[#allocation5 + $0x6c0] sm:$0xff]
    %v336 = vld [vmem:[#allocation5 + $0x6c8] sm:$0xff]
    %v337 = vld [vmem:[#allocation5 + $0x6d0] sm:$0xff]
    %v338 = vld [vmem:[#allocation5 + $0x6d8] sm:$0xff]
    %v339 = vld [vmem:[#allocation5 + $0x6e0] sm:$0xff]
    %v340 = vld [vmem:[#allocation5 + $0x6e8] sm:$0xff]
    %v341 = vld [vmem:[#allocation5 + $0x6f0] sm:$0xff]
    %v342 = vld [vmem:[#allocation5 + $0x6f8] sm:$0xff]
    %v343 = vld [vmem:[#allocation5 + $0x700] sm:$0xff]
    %v344 = vld [vmem:[#allocation5 + $0x708] sm:$0xff]
    %v345 = vld [vmem:[#allocation5 + $0x710] sm:$0xff]
    %v346 = vld [vmem:[#allocation5 + $0x718] sm:$0xff]
    %v347 = vld [vmem:[#allocation5 + $0x720] sm:$0xff]
    %v348 = vld [vmem:[#allocation5 + $0x728] sm:$0xff]
    %v349 = vld [vmem:[#allocation5 + $0x730] sm:$0xff]
    %v350 = vld [vmem:[#allocation5 + $0x738] sm:$0xff]
    %v351 = vld [vmem:[#allocation5 + $0x740] sm:$0xff]
    %v352 = vld [vmem:[#allocation5 + $0x748] sm:$0xff]
    %v353 = vld [vmem:[#allocation5 + $0x750] sm:$0xff]
    %v354 = vld [vmem:[#allocation5 + $0x758] sm:$0xff]
    %v355 = vld [vmem:[#allocation5 + $0x760] sm:$0xff]
    %v356 = vld [vmem:[#allocation5 + $0x768] sm:$0xff]
    %v357 = vld [vmem:[#allocation5 + $0x770] sm:$0xff]
    %v358 = vld [vmem:[#allocation5 + $0x778] sm:$0xff]
    %v359 = vld [vmem:[#allocation5 + $0x780] sm:$0xff]
    %v360 = vld [vmem:[#allocation5 + $0x788] sm:$0xff]
    %v361 = vld [vmem:[#allocation5 + $0x790] sm:$0xff]
    %v362 = vld [vmem:[#allocation5 + $0x798] sm:$0xff]
    %v363 = vld [vmem:[#allocation5 + $0x7a0] sm:$0xff]
    %v364 = vld [vmem:[#allocation5 + $0x7a8] sm:$0xff]
    %v365 = vld [vmem:[#allocation5 + $0x7b0] sm:$0xff]
    %v366 = vld [vmem:[#allocation5 + $0x7b8] sm:$0xff]
    %v367 = vld [vmem:[#allocation5 + $0x7c0] sm:$0xff]
    %v368 = vld [vmem:[#allocation5 + $0x7c8] sm:$0xff]
    %v369 = vld [vmem:[#allocation5 + $0x7d0] sm:$0xff]
    %v370 = vld [vmem:[#allocation5 + $0x7d8] sm:$0xff]
    %v371 = vld [vmem:[#allocation5 + $0x7e0] sm:$0xff]
    %v372 = vld [vmem:[#allocation5 + $0x7e8] sm:$0xff]
    %v373 = vld [vmem:[#allocation5 + $0x7f0] sm:$0xff]
    %v374 = vld [vmem:[#allocation5 + $0x7f8] sm:$0xff]
    %v375 = vld [vmem:[#allocation7] sm:$0xf]
    %v377 = vlaneseq
    %v378 = vshrl.u32 %v377, 7
    %v379 = vsub.s32 0, %v378
    %v380 = vrot.slane %v375, %v379
    %v381 = vlaneseq
    %v382 = vshrl.u32 %v381, 7
    %v383 = vsub.s32 1, %v382
    %v384 = vrot.slane %v375, %v383
    %v385 = vlaneseq
    %v386 = vshrl.u32 %v385, 7
    %v387 = vsub.s32 2, %v386
    %v388 = vrot.slane %v375, %v387
    %v389 = vlaneseq
    %v390 = vshrl.u32 %v389, 7
    %v391 = vsub.s32 3, %v390
    %v392 = vrot.slane %v375, %v391
    %v653 = vunpack.c.l.b16 %v119
    %v654 = vunpack.c.h.b16 %v119
    %v655 = vunpack.c.l.b16 %v120
    %v656 = vunpack.c.h.b16 %v120
    %v657 = vunpack.c.l.b16 %v121
    %v658 = vunpack.c.h.b16 %v121
    %v659 = vunpack.c.l.b16 %v122
    %v660 = vunpack.c.h.b16 %v122
    %v661 = vunpack.c.l.b16 %v123
    %v662 = vunpack.c.h.b16 %v123
    %v663 = vunpack.c.l.b16 %v124
    %v664 = vunpack.c.h.b16 %v124
    %v665 = vunpack.c.l.b16 %v125
    %v666 = vunpack.c.h.b16 %v125
    %v667 = vunpack.c.l.b16 %v126
    %v668 = vunpack.c.h.b16 %v126
    %v669 = vunpack.c.l.b16 %v127
    %v670 = vunpack.c.h.b16 %v127
    %v671 = vunpack.c.l.b16 %v128
    %v672 = vunpack.c.h.b16 %v128
    %v673 = vunpack.c.l.b16 %v129
    %v674 = vunpack.c.h.b16 %v129
    %v675 = vunpack.c.l.b16 %v130
    %v676 = vunpack.c.h.b16 %v130
    %v677 = vunpack.c.l.b16 %v131
    %v678 = vunpack.c.h.b16 %v131
    %v679 = vunpack.c.l.b16 %v132
    %v680 = vunpack.c.h.b16 %v132
    %v681 = vunpack.c.l.b16 %v133
    %v682 = vunpack.c.h.b16 %v133
    %v683 = vunpack.c.l.b16 %v134
    %v684 = vunpack.c.h.b16 %v134
    %v685 = vunpack.c.l.b16 %v135
    %v686 = vunpack.c.h.b16 %v135
    %v687 = vunpack.c.l.b16 %v136
    %v688 = vunpack.c.h.b16 %v136
    %v689 = vunpack.c.l.b16 %v137
    %v690 = vunpack.c.h.b16 %v137
    %v691 = vunpack.c.l.b16 %v138
    %v692 = vunpack.c.h.b16 %v138
    %v693 = vunpack.c.l.b16 %v139
    %v694 = vunpack.c.h.b16 %v139
    %v695 = vunpack.c.l.b16 %v140
    %v696 = vunpack.c.h.b16 %v140
    %v697 = vunpack.c.l.b16 %v141
    %v698 = vunpack.c.h.b16 %v141
    %v699 = vunpack.c.l.b16 %v142
    %v700 = vunpack.c.h.b16 %v142
    %v701 = vunpack.c.l.b16 %v143
    %v702 = vunpack.c.h.b16 %v143
    %v703 = vunpack.c.l.b16 %v144
    %v704 = vunpack.c.h.b16 %v144
    %v705 = vunpack.c.l.b16 %v145
    %v706 = vunpack.c.h.b16 %v145
    %v707 = vunpack.c.l.b16 %v146
    %v708 = vunpack.c.h.b16 %v146
    %v709 = vunpack.c.l.b16 %v147
    %v710 = vunpack.c.h.b16 %v147
    %v711 = vunpack.c.l.b16 %v148
    %v712 = vunpack.c.h.b16 %v148
    %v713 = vunpack.c.l.b16 %v149
    %v714 = vunpack.c.h.b16 %v149
    %v715 = vunpack.c.l.b16 %v150
    %v716 = vunpack.c.h.b16 %v150
    %v717 = vunpack.c.l.b16 %v151
    %v718 = vunpack.c.h.b16 %v151
    %v719 = vunpack.c.l.b16 %v152
    %v720 = vunpack.c.h.b16 %v152
    %v721 = vunpack.c.l.b16 %v153
    %v722 = vunpack.c.h.b16 %v153
    %v723 = vunpack.c.l.b16 %v154
    %v724 = vunpack.c.h.b16 %v154
    %v725 = vunpack.c.l.b16 %v155
    %v726 = vunpack.c.h.b16 %v155
    %v727 = vunpack.c.l.b16 %v156
    %v728 = vunpack.c.h.b16 %v156
    %v729 = vunpack.c.l.b16 %v157
    %v730 = vunpack.c.h.b16 %v157
    %v731 = vunpack.c.l.b16 %v158
    %v732 = vunpack.c.h.b16 %v158
    %v733 = vunpack.c.l.b16 %v159
    %v734 = vunpack.c.h.b16 %v159
    %v735 = vunpack.c.l.b16 %v160
    %v736 = vunpack.c.h.b16 %v160
    %v737 = vunpack.c.l.b16 %v161
    %v738 = vunpack.c.h.b16 %v161
    %v739 = vunpack.c.l.b16 %v162
    %v740 = vunpack.c.h.b16 %v162
    %v741 = vunpack.c.l.b16 %v163
    %v742 = vunpack.c.h.b16 %v163
    %v743 = vunpack.c.l.b16 %v164
    %v744 = vunpack.c.h.b16 %v164
    %v745 = vunpack.c.l.b16 %v165
    %v746 = vunpack.c.h.b16 %v165
    %v747 = vunpack.c.l.b16 %v166
    %v748 = vunpack.c.h.b16 %v166
    %v749 = vunpack.c.l.b16 %v167
    %v750 = vunpack.c.h.b16 %v167
    %v751 = vunpack.c.l.b16 %v168
    %v752 = vunpack.c.h.b16 %v168
    %v753 = vunpack.c.l.b16 %v169
    %v754 = vunpack.c.h.b16 %v169
    %v755 = vunpack.c.l.b16 %v170
    %v756 = vunpack.c.h.b16 %v170
    %v757 = vunpack.c.l.b16 %v171
    %v758 = vunpack.c.h.b16 %v171
    %v759 = vunpack.c.l.b16 %v172
    %v760 = vunpack.c.h.b16 %v172
    %v761 = vunpack.c.l.b16 %v173
    %v762 = vunpack.c.h.b16 %v173
    %v763 = vunpack.c.l.b16 %v174
    %v764 = vunpack.c.h.b16 %v174
    %v765 = vunpack.c.l.b16 %v175
    %v766 = vunpack.c.h.b16 %v175
    %v767 = vunpack.c.l.b16 %v176
    %v768 = vunpack.c.h.b16 %v176
    %v769 = vunpack.c.l.b16 %v177
    %v770 = vunpack.c.h.b16 %v177
    %v771 = vunpack.c.l.b16 %v178
    %v772 = vunpack.c.h.b16 %v178
    %v773 = vunpack.c.l.b16 %v179
    %v774 = vunpack.c.h.b16 %v179
    %v775 = vunpack.c.l.b16 %v180
    %v776 = vunpack.c.h.b16 %v180
    %v777 = vunpack.c.l.b16 %v181
    %v778 = vunpack.c.h.b16 %v181
    %v779 = vunpack.c.l.b16 %v182
    %v780 = vunpack.c.h.b16 %v182
    %v781 = vunpack.c.l.b16 %v183
    %v782 = vunpack.c.h.b16 %v183
    %v783 = vunpack.c.l.b16 %v184
    %v784 = vunpack.c.h.b16 %v184
    %v785 = vunpack.c.l.b16 %v185
    %v786 = vunpack.c.h.b16 %v185
    %v787 = vunpack.c.l.b16 %v186
    %v788 = vunpack.c.h.b16 %v186
    %v789 = vunpack.c.l.b16 %v187
    %v790 = vunpack.c.h.b16 %v187
    %v791 = vunpack.c.l.b16 %v188
    %v792 = vunpack.c.h.b16 %v188
    %v793 = vunpack.c.l.b16 %v189
    %v794 = vunpack.c.h.b16 %v189
    %v795 = vunpack.c.l.b16 %v190
    %v796 = vunpack.c.h.b16 %v190
    %v797 = vunpack.c.l.b16 %v191
    %v798 = vunpack.c.h.b16 %v191
    %v799 = vunpack.c.l.b16 %v192
    %v800 = vunpack.c.h.b16 %v192
    %v801 = vunpack.c.l.b16 %v193
    %v802 = vunpack.c.h.b16 %v193
    %v803 = vunpack.c.l.b16 %v194
    %v804 = vunpack.c.h.b16 %v194
    %v805 = vunpack.c.l.b16 %v195
    %v806 = vunpack.c.h.b16 %v195
    %v807 = vunpack.c.l.b16 %v196
    %v808 = vunpack.c.h.b16 %v196
    %v809 = vunpack.c.l.b16 %v197
    %v810 = vunpack.c.h.b16 %v197
    %v811 = vunpack.c.l.b16 %v198
    %v812 = vunpack.c.h.b16 %v198
    %v813 = vunpack.c.l.b16 %v199
    %v814 = vunpack.c.h.b16 %v199
    %v815 = vunpack.c.l.b16 %v200
    %v816 = vunpack.c.h.b16 %v200
    %v817 = vunpack.c.l.b16 %v201
    %v818 = vunpack.c.h.b16 %v201
    %v819 = vunpack.c.l.b16 %v202
    %v820 = vunpack.c.h.b16 %v202
    %v821 = vunpack.c.l.b16 %v203
    %v822 = vunpack.c.h.b16 %v203
    %v823 = vunpack.c.l.b16 %v204
    %v824 = vunpack.c.h.b16 %v204
    %v825 = vunpack.c.l.b16 %v205
    %v826 = vunpack.c.h.b16 %v205
    %v827 = vunpack.c.l.b16 %v206
    %v828 = vunpack.c.h.b16 %v206
    %v829 = vunpack.c.l.b16 %v207
    %v830 = vunpack.c.h.b16 %v207
    %v831 = vunpack.c.l.b16 %v208
    %v832 = vunpack.c.h.b16 %v208
    %v833 = vunpack.c.l.b16 %v209
    %v834 = vunpack.c.h.b16 %v209
    %v835 = vunpack.c.l.b16 %v210
    %v836 = vunpack.c.h.b16 %v210
    %v837 = vunpack.c.l.b16 %v211
    %v838 = vunpack.c.h.b16 %v211
    %v839 = vunpack.c.l.b16 %v212
    %v840 = vunpack.c.h.b16 %v212
    %v841 = vunpack.c.l.b16 %v213
    %v842 = vunpack.c.h.b16 %v213
    %v843 = vunpack.c.l.b16 %v214
    %v844 = vunpack.c.h.b16 %v214
    %v845 = vunpack.c.l.b16 %v215
    %v846 = vunpack.c.h.b16 %v215
    %v847 = vunpack.c.l.b16 %v216
    %v848 = vunpack.c.h.b16 %v216
    %v849 = vunpack.c.l.b16 %v217
    %v850 = vunpack.c.h.b16 %v217
    %v851 = vunpack.c.l.b16 %v218
    %v852 = vunpack.c.h.b16 %v218
    %v853 = vunpack.c.l.b16 %v219
    %v854 = vunpack.c.h.b16 %v219
    %v855 = vunpack.c.l.b16 %v220
    %v856 = vunpack.c.h.b16 %v220
    %v857 = vunpack.c.l.b16 %v221
    %v858 = vunpack.c.h.b16 %v221
    %v859 = vunpack.c.l.b16 %v222
    %v860 = vunpack.c.h.b16 %v222
    %v861 = vunpack.c.l.b16 %v223
    %v862 = vunpack.c.h.b16 %v223
    %v863 = vunpack.c.l.b16 %v224
    %v864 = vunpack.c.h.b16 %v224
    %v865 = vunpack.c.l.b16 %v225
    %v866 = vunpack.c.h.b16 %v225
    %v867 = vunpack.c.l.b16 %v226
    %v868 = vunpack.c.h.b16 %v226
    %v869 = vunpack.c.l.b16 %v227
    %v870 = vunpack.c.h.b16 %v227
    %v871 = vunpack.c.l.b16 %v228
    %v872 = vunpack.c.h.b16 %v228
    %v873 = vunpack.c.l.b16 %v229
    %v874 = vunpack.c.h.b16 %v229
    %v875 = vunpack.c.l.b16 %v230
    %v876 = vunpack.c.h.b16 %v230
    %v877 = vunpack.c.l.b16 %v231
    %v878 = vunpack.c.h.b16 %v231
    %v879 = vunpack.c.l.b16 %v232
    %v880 = vunpack.c.h.b16 %v232
    %v881 = vunpack.c.l.b16 %v233
    %v882 = vunpack.c.h.b16 %v233
    %v883 = vunpack.c.l.b16 %v234
    %v884 = vunpack.c.h.b16 %v234
    %v885 = vunpack.c.l.b16 %v235
    %v886 = vunpack.c.h.b16 %v235
    %v887 = vunpack.c.l.b16 %v236
    %v888 = vunpack.c.h.b16 %v236
    %v889 = vunpack.c.l.b16 %v237
    %v890 = vunpack.c.h.b16 %v237
    %v891 = vunpack.c.l.b16 %v238
    %v892 = vunpack.c.h.b16 %v238
    %v893 = vunpack.c.l.b16 %v239
    %v894 = vunpack.c.h.b16 %v239
    %v895 = vunpack.c.l.b16 %v240
    %v896 = vunpack.c.h.b16 %v240
    %v897 = vunpack.c.l.b16 %v241
    %v898 = vunpack.c.h.b16 %v241
    %v899 = vunpack.c.l.b16 %v242
    %v900 = vunpack.c.h.b16 %v242
    %v901 = vunpack.c.l.b16 %v243
    %v902 = vunpack.c.h.b16 %v243
    %v903 = vunpack.c.l.b16 %v244
    %v904 = vunpack.c.h.b16 %v244
    %v905 = vunpack.c.l.b16 %v245
    %v906 = vunpack.c.h.b16 %v245
    %v907 = vunpack.c.l.b16 %v246
    %v908 = vunpack.c.h.b16 %v246
    %v909 = vunpack.c.l.b16 %v247
    %v910 = vunpack.c.h.b16 %v247
    %v911 = vunpack.c.l.b16 %v248
    %v912 = vunpack.c.h.b16 %v248
    %v913 = vunpack.c.l.b16 %v249
    %v914 = vunpack.c.h.b16 %v249
    %v915 = vunpack.c.l.b16 %v250
    %v916 = vunpack.c.h.b16 %v250
    %v917 = vunpack.c.l.b16 %v251
    %v918 = vunpack.c.h.b16 %v251
    %v919 = vunpack.c.l.b16 %v252
    %v920 = vunpack.c.h.b16 %v252
    %v921 = vunpack.c.l.b16 %v253
    %v922 = vunpack.c.h.b16 %v253
    %v923 = vunpack.c.l.b16 %v254
    %v924 = vunpack.c.h.b16 %v254
    %v925 = vunpack.c.l.b16 %v255
    %v926 = vunpack.c.h.b16 %v255
    %v927 = vunpack.c.l.b16 %v256
    %v928 = vunpack.c.h.b16 %v256
    %v929 = vunpack.c.l.b16 %v257
    %v930 = vunpack.c.h.b16 %v257
    %v931 = vunpack.c.l.b16 %v258
    %v932 = vunpack.c.h.b16 %v258
    %v933 = vunpack.c.l.b16 %v259
    %v934 = vunpack.c.h.b16 %v259
    %v935 = vunpack.c.l.b16 %v260
    %v936 = vunpack.c.h.b16 %v260
    %v937 = vunpack.c.l.b16 %v261
    %v938 = vunpack.c.h.b16 %v261
    %v939 = vunpack.c.l.b16 %v262
    %v940 = vunpack.c.h.b16 %v262
    %v941 = vunpack.c.l.b16 %v263
    %v942 = vunpack.c.h.b16 %v263
    %v943 = vunpack.c.l.b16 %v264
    %v944 = vunpack.c.h.b16 %v264
    %v945 = vunpack.c.l.b16 %v265
    %v946 = vunpack.c.h.b16 %v265
    %v947 = vunpack.c.l.b16 %v266
    %v948 = vunpack.c.h.b16 %v266
    %v949 = vunpack.c.l.b16 %v267
    %v950 = vunpack.c.h.b16 %v267
    %v951 = vunpack.c.l.b16 %v268
    %v952 = vunpack.c.h.b16 %v268
    %v953 = vunpack.c.l.b16 %v269
    %v954 = vunpack.c.h.b16 %v269
    %v955 = vunpack.c.l.b16 %v270
    %v956 = vunpack.c.h.b16 %v270
    %v957 = vunpack.c.l.b16 %v271
    %v958 = vunpack.c.h.b16 %v271
    %v959 = vunpack.c.l.b16 %v272
    %v960 = vunpack.c.h.b16 %v272
    %v961 = vunpack.c.l.b16 %v273
    %v962 = vunpack.c.h.b16 %v273
    %v963 = vunpack.c.l.b16 %v274
    %v964 = vunpack.c.h.b16 %v274
    %v965 = vunpack.c.l.b16 %v275
    %v966 = vunpack.c.h.b16 %v275
    %v967 = vunpack.c.l.b16 %v276
    %v968 = vunpack.c.h.b16 %v276
    %v969 = vunpack.c.l.b16 %v277
    %v970 = vunpack.c.h.b16 %v277
    %v971 = vunpack.c.l.b16 %v278
    %v972 = vunpack.c.h.b16 %v278
    %v973 = vunpack.c.l.b16 %v279
    %v974 = vunpack.c.h.b16 %v279
    %v975 = vunpack.c.l.b16 %v280
    %v976 = vunpack.c.h.b16 %v280
    %v977 = vunpack.c.l.b16 %v281
    %v978 = vunpack.c.h.b16 %v281
    %v979 = vunpack.c.l.b16 %v282
    %v980 = vunpack.c.h.b16 %v282
    %v981 = vunpack.c.l.b16 %v283
    %v982 = vunpack.c.h.b16 %v283
    %v983 = vunpack.c.l.b16 %v284
    %v984 = vunpack.c.h.b16 %v284
    %v985 = vunpack.c.l.b16 %v285
    %v986 = vunpack.c.h.b16 %v285
    %v987 = vunpack.c.l.b16 %v286
    %v988 = vunpack.c.h.b16 %v286
    %v989 = vunpack.c.l.b16 %v287
    %v990 = vunpack.c.h.b16 %v287
    %v991 = vunpack.c.l.b16 %v288
    %v992 = vunpack.c.h.b16 %v288
    %v993 = vunpack.c.l.b16 %v289
    %v994 = vunpack.c.h.b16 %v289
    %v995 = vunpack.c.l.b16 %v290
    %v996 = vunpack.c.h.b16 %v290
    %v997 = vunpack.c.l.b16 %v291
    %v998 = vunpack.c.h.b16 %v291
    %v999 = vunpack.c.l.b16 %v292
    %v1000 = vunpack.c.h.b16 %v292
    %v1001 = vunpack.c.l.b16 %v293
    %v1002 = vunpack.c.h.b16 %v293
    %v1003 = vunpack.c.l.b16 %v294
    %v1004 = vunpack.c.h.b16 %v294
    %v1005 = vunpack.c.l.b16 %v295
    %v1006 = vunpack.c.h.b16 %v295
    %v1007 = vunpack.c.l.b16 %v296
    %v1008 = vunpack.c.h.b16 %v296
    %v1009 = vunpack.c.l.b16 %v297
    %v1010 = vunpack.c.h.b16 %v297
    %v1011 = vunpack.c.l.b16 %v298
    %v1012 = vunpack.c.h.b16 %v298
    %v1013 = vunpack.c.l.b16 %v299
    %v1014 = vunpack.c.h.b16 %v299
    %v1015 = vunpack.c.l.b16 %v300
    %v1016 = vunpack.c.h.b16 %v300
    %v1017 = vunpack.c.l.b16 %v301
    %v1018 = vunpack.c.h.b16 %v301
    %v1019 = vunpack.c.l.b16 %v302
    %v1020 = vunpack.c.h.b16 %v302
    %v1021 = vunpack.c.l.b16 %v303
    %v1022 = vunpack.c.h.b16 %v303
    %v1023 = vunpack.c.l.b16 %v304
    %v1024 = vunpack.c.h.b16 %v304
    %v1025 = vunpack.c.l.b16 %v305
    %v1026 = vunpack.c.h.b16 %v305
    %v1027 = vunpack.c.l.b16 %v306
    %v1028 = vunpack.c.h.b16 %v306
    %v1029 = vunpack.c.l.b16 %v307
    %v1030 = vunpack.c.h.b16 %v307
    %v1031 = vunpack.c.l.b16 %v308
    %v1032 = vunpack.c.h.b16 %v308
    %v1033 = vunpack.c.l.b16 %v309
    %v1034 = vunpack.c.h.b16 %v309
    %v1035 = vunpack.c.l.b16 %v310
    %v1036 = vunpack.c.h.b16 %v310
    %v1037 = vunpack.c.l.b16 %v311
    %v1038 = vunpack.c.h.b16 %v311
    %v1039 = vunpack.c.l.b16 %v312
    %v1040 = vunpack.c.h.b16 %v312
    %v1041 = vunpack.c.l.b16 %v313
    %v1042 = vunpack.c.h.b16 %v313
    %v1043 = vunpack.c.l.b16 %v314
    %v1044 = vunpack.c.h.b16 %v314
    %v1045 = vunpack.c.l.b16 %v315
    %v1046 = vunpack.c.h.b16 %v315
    %v1047 = vunpack.c.l.b16 %v316
    %v1048 = vunpack.c.h.b16 %v316
    %v1049 = vunpack.c.l.b16 %v317
    %v1050 = vunpack.c.h.b16 %v317
    %v1051 = vunpack.c.l.b16 %v318
    %v1052 = vunpack.c.h.b16 %v318
    %v1053 = vunpack.c.l.b16 %v319
    %v1054 = vunpack.c.h.b16 %v319
    %v1055 = vunpack.c.l.b16 %v320
    %v1056 = vunpack.c.h.b16 %v320
    %v1057 = vunpack.c.l.b16 %v321
    %v1058 = vunpack.c.h.b16 %v321
    %v1059 = vunpack.c.l.b16 %v322
    %v1060 = vunpack.c.h.b16 %v322
    %v1061 = vunpack.c.l.b16 %v323
    %v1062 = vunpack.c.h.b16 %v323
    %v1063 = vunpack.c.l.b16 %v324
    %v1064 = vunpack.c.h.b16 %v324
    %v1065 = vunpack.c.l.b16 %v325
    %v1066 = vunpack.c.h.b16 %v325
    %v1067 = vunpack.c.l.b16 %v326
    %v1068 = vunpack.c.h.b16 %v326
    %v1069 = vunpack.c.l.b16 %v327
    %v1070 = vunpack.c.h.b16 %v327
    %v1071 = vunpack.c.l.b16 %v328
    %v1072 = vunpack.c.h.b16 %v328
    %v1073 = vunpack.c.l.b16 %v329
    %v1074 = vunpack.c.h.b16 %v329
    %v1075 = vunpack.c.l.b16 %v330
    %v1076 = vunpack.c.h.b16 %v330
    %v1077 = vunpack.c.l.b16 %v331
    %v1078 = vunpack.c.h.b16 %v331
    %v1079 = vunpack.c.l.b16 %v332
    %v1080 = vunpack.c.h.b16 %v332
    %v1081 = vunpack.c.l.b16 %v333
    %v1082 = vunpack.c.h.b16 %v333
    %v1083 = vunpack.c.l.b16 %v334
    %v1084 = vunpack.c.h.b16 %v334
    %v1085 = vunpack.c.l.b16 %v335
    %v1086 = vunpack.c.h.b16 %v335
    %v1087 = vunpack.c.l.b16 %v336
    %v1088 = vunpack.c.h.b16 %v336
    %v1089 = vunpack.c.l.b16 %v337
    %v1090 = vunpack.c.h.b16 %v337
    %v1091 = vunpack.c.l.b16 %v338
    %v1092 = vunpack.c.h.b16 %v338
    %v1093 = vunpack.c.l.b16 %v339
    %v1094 = vunpack.c.h.b16 %v339
    %v1095 = vunpack.c.l.b16 %v340
    %v1096 = vunpack.c.h.b16 %v340
    %v1097 = vunpack.c.l.b16 %v341
    %v1098 = vunpack.c.h.b16 %v341
    %v1099 = vunpack.c.l.b16 %v342
    %v1100 = vunpack.c.h.b16 %v342
    %v1101 = vunpack.c.l.b16 %v343
    %v1102 = vunpack.c.h.b16 %v343
    %v1103 = vunpack.c.l.b16 %v344
    %v1104 = vunpack.c.h.b16 %v344
    %v1105 = vunpack.c.l.b16 %v345
    %v1106 = vunpack.c.h.b16 %v345
    %v1107 = vunpack.c.l.b16 %v346
    %v1108 = vunpack.c.h.b16 %v346
    %v1109 = vunpack.c.l.b16 %v347
    %v1110 = vunpack.c.h.b16 %v347
    %v1111 = vunpack.c.l.b16 %v348
    %v1112 = vunpack.c.h.b16 %v348
    %v1113 = vunpack.c.l.b16 %v349
    %v1114 = vunpack.c.h.b16 %v349
    %v1115 = vunpack.c.l.b16 %v350
    %v1116 = vunpack.c.h.b16 %v350
    %v1117 = vunpack.c.l.b16 %v351
    %v1118 = vunpack.c.h.b16 %v351
    %v1119 = vunpack.c.l.b16 %v352
    %v1120 = vunpack.c.h.b16 %v352
    %v1121 = vunpack.c.l.b16 %v353
    %v1122 = vunpack.c.h.b16 %v353
    %v1123 = vunpack.c.l.b16 %v354
    %v1124 = vunpack.c.h.b16 %v354
    %v1125 = vunpack.c.l.b16 %v355
    %v1126 = vunpack.c.h.b16 %v355
    %v1127 = vunpack.c.l.b16 %v356
    %v1128 = vunpack.c.h.b16 %v356
    %v1129 = vunpack.c.l.b16 %v357
    %v1130 = vunpack.c.h.b16 %v357
    %v1131 = vunpack.c.l.b16 %v358
    %v1132 = vunpack.c.h.b16 %v358
    %v1133 = vunpack.c.l.b16 %v359
    %v1134 = vunpack.c.h.b16 %v359
    %v1135 = vunpack.c.l.b16 %v360
    %v1136 = vunpack.c.h.b16 %v360
    %v1137 = vunpack.c.l.b16 %v361
    %v1138 = vunpack.c.h.b16 %v361
    %v1139 = vunpack.c.l.b16 %v362
    %v1140 = vunpack.c.h.b16 %v362
    %v1141 = vunpack.c.l.b16 %v363
    %v1142 = vunpack.c.h.b16 %v363
    %v1143 = vunpack.c.l.b16 %v364
    %v1144 = vunpack.c.h.b16 %v364
    %v1145 = vunpack.c.l.b16 %v365
    %v1146 = vunpack.c.h.b16 %v365
    %v1147 = vunpack.c.l.b16 %v366
    %v1148 = vunpack.c.h.b16 %v366
    %v1149 = vunpack.c.l.b16 %v367
    %v1150 = vunpack.c.h.b16 %v367
    %v1151 = vunpack.c.l.b16 %v368
    %v1152 = vunpack.c.h.b16 %v368
    %v1153 = vunpack.c.l.b16 %v369
    %v1154 = vunpack.c.h.b16 %v369
    %v1155 = vunpack.c.l.b16 %v370
    %v1156 = vunpack.c.h.b16 %v370
    %v1157 = vunpack.c.l.b16 %v371
    %v1158 = vunpack.c.h.b16 %v371
    %v1159 = vunpack.c.l.b16 %v372
    %v1160 = vunpack.c.h.b16 %v372
    %v1161 = vunpack.c.l.b16 %v373
    %v1162 = vunpack.c.h.b16 %v373
    %v1163 = vunpack.c.l.b16 %v374
    %v1164 = vunpack.c.h.b16 %v374
    %v1165 = vpack.c.b16 %v657, %v653
    %v1166 = vpack.c.b16 %v658, %v654
    %v1167 = vpack.c.b16 %v659, %v655
    %v1168 = vpack.c.b16 %v660, %v656
    %v1169 = vpack.c.b16 %v665, %v661
    %v1170 = vpack.c.b16 %v666, %v662
    %v1171 = vpack.c.b16 %v667, %v663
    %v1172 = vpack.c.b16 %v668, %v664
    %v1173 = vpack.c.b16 %v673, %v669
    %v1174 = vpack.c.b16 %v674, %v670
    %v1175 = vpack.c.b16 %v675, %v671
    %v1176 = vpack.c.b16 %v676, %v672
    %v1177 = vpack.c.b16 %v681, %v677
    %v1178 = vpack.c.b16 %v682, %v678
    %v1179 = vpack.c.b16 %v683, %v679
    %v1180 = vpack.c.b16 %v684, %v680
    %v1181 = vpack.c.b16 %v689, %v685
    %v1182 = vpack.c.b16 %v690, %v686
    %v1183 = vpack.c.b16 %v691, %v687
    %v1184 = vpack.c.b16 %v692, %v688
    %v1185 = vpack.c.b16 %v697, %v693
    %v1186 = vpack.c.b16 %v698, %v694
    %v1187 = vpack.c.b16 %v699, %v695
    %v1188 = vpack.c.b16 %v700, %v696
    %v1189 = vpack.c.b16 %v705, %v701
    %v1190 = vpack.c.b16 %v706, %v702
    %v1191 = vpack.c.b16 %v707, %v703
    %v1192 = vpack.c.b16 %v708, %v704
    %v1193 = vpack.c.b16 %v713, %v709
    %v1194 = vpack.c.b16 %v714, %v710
    %v1195 = vpack.c.b16 %v715, %v711
    %v1196 = vpack.c.b16 %v716, %v712
    %v1197 = vpack.c.b16 %v721, %v717
    %v1198 = vpack.c.b16 %v722, %v718
    %v1199 = vpack.c.b16 %v723, %v719
    %v1200 = vpack.c.b16 %v724, %v720
    %v1201 = vpack.c.b16 %v729, %v725
    %v1202 = vpack.c.b16 %v730, %v726
    %v1203 = vpack.c.b16 %v731, %v727
    %v1204 = vpack.c.b16 %v732, %v728
    %v1205 = vpack.c.b16 %v737, %v733
    %v1206 = vpack.c.b16 %v738, %v734
    %v1207 = vpack.c.b16 %v739, %v735
    %v1208 = vpack.c.b16 %v740, %v736
    %v1209 = vpack.c.b16 %v745, %v741
    %v1210 = vpack.c.b16 %v746, %v742
    %v1211 = vpack.c.b16 %v747, %v743
    %v1212 = vpack.c.b16 %v748, %v744
    %v1213 = vpack.c.b16 %v753, %v749
    %v1214 = vpack.c.b16 %v754, %v750
    %v1215 = vpack.c.b16 %v755, %v751
    %v1216 = vpack.c.b16 %v756, %v752
    %v1217 = vpack.c.b16 %v761, %v757
    %v1218 = vpack.c.b16 %v762, %v758
    %v1219 = vpack.c.b16 %v763, %v759
    %v1220 = vpack.c.b16 %v764, %v760
    %v1221 = vpack.c.b16 %v769, %v765
    %v1222 = vpack.c.b16 %v770, %v766
    %v1223 = vpack.c.b16 %v771, %v767
    %v1224 = vpack.c.b16 %v772, %v768
    %v1225 = vpack.c.b16 %v777, %v773
    %v1226 = vpack.c.b16 %v778, %v774
    %v1227 = vpack.c.b16 %v779, %v775
    %v1228 = vpack.c.b16 %v780, %v776
    %v1229 = vpack.c.b16 %v785, %v781
    %v1230 = vpack.c.b16 %v786, %v782
    %v1231 = vpack.c.b16 %v787, %v783
    %v1232 = vpack.c.b16 %v788, %v784
    %v1233 = vpack.c.b16 %v793, %v789
    %v1234 = vpack.c.b16 %v794, %v790
    %v1235 = vpack.c.b16 %v795, %v791
    %v1236 = vpack.c.b16 %v796, %v792
    %v1237 = vpack.c.b16 %v801, %v797
    %v1238 = vpack.c.b16 %v802, %v798
    %v1239 = vpack.c.b16 %v803, %v799
    %v1240 = vpack.c.b16 %v804, %v800
    %v1241 = vpack.c.b16 %v809, %v805
    %v1242 = vpack.c.b16 %v810, %v806
    %v1243 = vpack.c.b16 %v811, %v807
    %v1244 = vpack.c.b16 %v812, %v808
    %v1245 = vpack.c.b16 %v817, %v813
    %v1246 = vpack.c.b16 %v818, %v814
    %v1247 = vpack.c.b16 %v819, %v815
    %v1248 = vpack.c.b16 %v820, %v816
    %v1249 = vpack.c.b16 %v825, %v821
    %v1250 = vpack.c.b16 %v826, %v822
    %v1251 = vpack.c.b16 %v827, %v823
    %v1252 = vpack.c.b16 %v828, %v824
    %v1253 = vpack.c.b16 %v833, %v829
    %v1254 = vpack.c.b16 %v834, %v830
    %v1255 = vpack.c.b16 %v835, %v831
    %v1256 = vpack.c.b16 %v836, %v832
    %v1257 = vpack.c.b16 %v841, %v837
    %v1258 = vpack.c.b16 %v842, %v838
    %v1259 = vpack.c.b16 %v843, %v839
    %v1260 = vpack.c.b16 %v844, %v840
    %v1261 = vpack.c.b16 %v849, %v845
    %v1262 = vpack.c.b16 %v850, %v846
    %v1263 = vpack.c.b16 %v851, %v847
    %v1264 = vpack.c.b16 %v852, %v848
    %v1265 = vpack.c.b16 %v857, %v853
    %v1266 = vpack.c.b16 %v858, %v854
    %v1267 = vpack.c.b16 %v859, %v855
    %v1268 = vpack.c.b16 %v860, %v856
    %v1269 = vpack.c.b16 %v865, %v861
    %v1270 = vpack.c.b16 %v866, %v862
    %v1271 = vpack.c.b16 %v867, %v863
    %v1272 = vpack.c.b16 %v868, %v864
    %v1273 = vpack.c.b16 %v873, %v869
    %v1274 = vpack.c.b16 %v874, %v870
    %v1275 = vpack.c.b16 %v875, %v871
    %v1276 = vpack.c.b16 %v876, %v872
    %v1277 = vpack.c.b16 %v881, %v877
    %v1278 = vpack.c.b16 %v882, %v878
    %v1279 = vpack.c.b16 %v883, %v879
    %v1280 = vpack.c.b16 %v884, %v880
    %v1281 = vpack.c.b16 %v889, %v885
    %v1282 = vpack.c.b16 %v890, %v886
    %v1283 = vpack.c.b16 %v891, %v887
    %v1284 = vpack.c.b16 %v892, %v888
    %v1285 = vpack.c.b16 %v897, %v893
    %v1286 = vpack.c.b16 %v898, %v894
    %v1287 = vpack.c.b16 %v899, %v895
    %v1288 = vpack.c.b16 %v900, %v896
    %v1289 = vpack.c.b16 %v905, %v901
    %v1290 = vpack.c.b16 %v906, %v902
    %v1291 = vpack.c.b16 %v907, %v903
    %v1292 = vpack.c.b16 %v908, %v904
    %v1293 = vpack.c.b16 %v913, %v909
    %v1294 = vpack.c.b16 %v914, %v910
    %v1295 = vpack.c.b16 %v915, %v911
    %v1296 = vpack.c.b16 %v916, %v912
    %v1297 = vpack.c.b16 %v921, %v917
    %v1298 = vpack.c.b16 %v922, %v918
    %v1299 = vpack.c.b16 %v923, %v919
    %v1300 = vpack.c.b16 %v924, %v920
    %v1301 = vpack.c.b16 %v929, %v925
    %v1302 = vpack.c.b16 %v930, %v926
    %v1303 = vpack.c.b16 %v931, %v927
    %v1304 = vpack.c.b16 %v932, %v928
    %v1305 = vpack.c.b16 %v937, %v933
    %v1306 = vpack.c.b16 %v938, %v934
    %v1307 = vpack.c.b16 %v939, %v935
    %v1308 = vpack.c.b16 %v940, %v936
    %v1309 = vpack.c.b16 %v945, %v941
    %v1310 = vpack.c.b16 %v946, %v942
    %v1311 = vpack.c.b16 %v947, %v943
    %v1312 = vpack.c.b16 %v948, %v944
    %v1313 = vpack.c.b16 %v953, %v949
    %v1314 = vpack.c.b16 %v954, %v950
    %v1315 = vpack.c.b16 %v955, %v951
    %v1316 = vpack.c.b16 %v956, %v952
    %v1317 = vpack.c.b16 %v961, %v957
    %v1318 = vpack.c.b16 %v962, %v958
    %v1319 = vpack.c.b16 %v963, %v959
    %v1320 = vpack.c.b16 %v964, %v960
    %v1321 = vpack.c.b16 %v969, %v965
    %v1322 = vpack.c.b16 %v970, %v966
    %v1323 = vpack.c.b16 %v971, %v967
    %v1324 = vpack.c.b16 %v972, %v968
    %v1325 = vpack.c.b16 %v977, %v973
    %v1326 = vpack.c.b16 %v978, %v974
    %v1327 = vpack.c.b16 %v979, %v975
    %v1328 = vpack.c.b16 %v980, %v976
    %v1329 = vpack.c.b16 %v985, %v981
    %v1330 = vpack.c.b16 %v986, %v982
    %v1331 = vpack.c.b16 %v987, %v983
    %v1332 = vpack.c.b16 %v988, %v984
    %v1333 = vpack.c.b16 %v993, %v989
    %v1334 = vpack.c.b16 %v994, %v990
    %v1335 = vpack.c.b16 %v995, %v991
    %v1336 = vpack.c.b16 %v996, %v992
    %v1337 = vpack.c.b16 %v1001, %v997
    %v1338 = vpack.c.b16 %v1002, %v998
    %v1339 = vpack.c.b16 %v1003, %v999
    %v1340 = vpack.c.b16 %v1004, %v1000
    %v1341 = vpack.c.b16 %v1009, %v1005
    %v1342 = vpack.c.b16 %v1010, %v1006
    %v1343 = vpack.c.b16 %v1011, %v1007
    %v1344 = vpack.c.b16 %v1012, %v1008
    %v1345 = vpack.c.b16 %v1017, %v1013
    %v1346 = vpack.c.b16 %v1018, %v1014
    %v1347 = vpack.c.b16 %v1019, %v1015
    %v1348 = vpack.c.b16 %v1020, %v1016
    %v1349 = vpack.c.b16 %v1025, %v1021
    %v1350 = vpack.c.b16 %v1026, %v1022
    %v1351 = vpack.c.b16 %v1027, %v1023
    %v1352 = vpack.c.b16 %v1028, %v1024
    %v1353 = vpack.c.b16 %v1033, %v1029
    %v1354 = vpack.c.b16 %v1034, %v1030
    %v1355 = vpack.c.b16 %v1035, %v1031
    %v1356 = vpack.c.b16 %v1036, %v1032
    %v1357 = vpack.c.b16 %v1041, %v1037
    %v1358 = vpack.c.b16 %v1042, %v1038
    %v1359 = vpack.c.b16 %v1043, %v1039
    %v1360 = vpack.c.b16 %v1044, %v1040
    %v1361 = vpack.c.b16 %v1049, %v1045
    %v1362 = vpack.c.b16 %v1050, %v1046
    %v1363 = vpack.c.b16 %v1051, %v1047
    %v1364 = vpack.c.b16 %v1052, %v1048
    %v1365 = vpack.c.b16 %v1057, %v1053
    %v1366 = vpack.c.b16 %v1058, %v1054
    %v1367 = vpack.c.b16 %v1059, %v1055
    %v1368 = vpack.c.b16 %v1060, %v1056
    %v1369 = vpack.c.b16 %v1065, %v1061
    %v1370 = vpack.c.b16 %v1066, %v1062
    %v1371 = vpack.c.b16 %v1067, %v1063
    %v1372 = vpack.c.b16 %v1068, %v1064
    %v1373 = vpack.c.b16 %v1073, %v1069
    %v1374 = vpack.c.b16 %v1074, %v1070
    %v1375 = vpack.c.b16 %v1075, %v1071
    %v1376 = vpack.c.b16 %v1076, %v1072
    %v1377 = vpack.c.b16 %v1081, %v1077
    %v1378 = vpack.c.b16 %v1082, %v1078
    %v1379 = vpack.c.b16 %v1083, %v1079
    %v1380 = vpack.c.b16 %v1084, %v1080
    %v1381 = vpack.c.b16 %v1089, %v1085
    %v1382 = vpack.c.b16 %v1090, %v1086
    %v1383 = vpack.c.b16 %v1091, %v1087
    %v1384 = vpack.c.b16 %v1092, %v1088
    %v1385 = vpack.c.b16 %v1097, %v1093
    %v1386 = vpack.c.b16 %v1098, %v1094
    %v1387 = vpack.c.b16 %v1099, %v1095
    %v1388 = vpack.c.b16 %v1100, %v1096
    %v1389 = vpack.c.b16 %v1105, %v1101
    %v1390 = vpack.c.b16 %v1106, %v1102
    %v1391 = vpack.c.b16 %v1107, %v1103
    %v1392 = vpack.c.b16 %v1108, %v1104
    %v1393 = vpack.c.b16 %v1113, %v1109
    %v1394 = vpack.c.b16 %v1114, %v1110
    %v1395 = vpack.c.b16 %v1115, %v1111
    %v1396 = vpack.c.b16 %v1116, %v1112
    %v1397 = vpack.c.b16 %v1121, %v1117
    %v1398 = vpack.c.b16 %v1122, %v1118
    %v1399 = vpack.c.b16 %v1123, %v1119
    %v1400 = vpack.c.b16 %v1124, %v1120
    %v1401 = vpack.c.b16 %v1129, %v1125
    %v1402 = vpack.c.b16 %v1130, %v1126
    %v1403 = vpack.c.b16 %v1131, %v1127
    %v1404 = vpack.c.b16 %v1132, %v1128
    %v1405 = vpack.c.b16 %v1137, %v1133
    %v1406 = vpack.c.b16 %v1138, %v1134
    %v1407 = vpack.c.b16 %v1139, %v1135
    %v1408 = vpack.c.b16 %v1140, %v1136
    %v1409 = vpack.c.b16 %v1145, %v1141
    %v1410 = vpack.c.b16 %v1146, %v1142
    %v1411 = vpack.c.b16 %v1147, %v1143
    %v1412 = vpack.c.b16 %v1148, %v1144
    %v1413 = vpack.c.b16 %v1153, %v1149
    %v1414 = vpack.c.b16 %v1154, %v1150
    %v1415 = vpack.c.b16 %v1155, %v1151
    %v1416 = vpack.c.b16 %v1156, %v1152
    %v1417 = vpack.c.b16 %v1161, %v1157
    %v1418 = vpack.c.b16 %v1162, %v1158
    %v1419 = vpack.c.b16 %v1163, %v1159
    %v1420 = vpack.c.b16 %v1164, %v1160
    %1677 = vmatprep.subr.bf16.mxu0 %v1194
    %1678 = vmatpush1.bf16.msra.mxu0 %v1193
    %1679 = vmatprep.subr.bf16.mxu0 %v1190
    %1680 = vmatpush1.bf16.msra.mxu0 %v1189
    %1681 = vmatprep.subr.bf16.mxu0 %v1186
    %1682 = vmatpush1.bf16.msra.mxu0 %v1185
    %1683 = vmatprep.subr.bf16.mxu0 %v1182
    %1684 = vmatpush1.bf16.msra.mxu0 %v1181
    %1685 = vmatprep.subr.bf16.mxu0 %v1178
    %1686 = vmatpush1.bf16.msra.mxu0 %v1177
    %1687 = vmatprep.subr.bf16.mxu0 %v1174
    %1688 = vmatpush1.bf16.msra.mxu0 %v1173
    %1689 = vmatprep.subr.bf16.mxu0 %v1170
    %1690 = vmatpush1.bf16.msra.mxu0 %v1169
    %1691 = vmatprep.subr.bf16.mxu0 %v1166
    %1692 = vmatpush1.bf16.msra.mxu0 %v1165
    %1693 = vmatprep.subr.bf16.mxu0 %v1226
    %1694 = vmatpush2.bf16.msra.mxu0 %v1225
    %1695 = vmatprep.subr.bf16.mxu0 %v1222
    %1696 = vmatpush2.bf16.msra.mxu0 %v1221
    %1697 = vmatprep.subr.bf16.mxu0 %v1218
    %1698 = vmatpush2.bf16.msra.mxu0 %v1217
    %1699 = vmatprep.subr.bf16.mxu0 %v1214
    %1700 = vmatpush2.bf16.msra.mxu0 %v1213
    %1701 = vmatprep.subr.bf16.mxu0 %v1210
    %1702 = vmatpush2.bf16.msra.mxu0 %v1209
    %1703 = vmatprep.subr.bf16.mxu0 %v1206
    %1704 = vmatpush2.bf16.msra.mxu0 %v1205
    %1705 = vmatprep.subr.bf16.mxu0 %v1202
    %1706 = vmatpush2.bf16.msra.mxu0 %v1201
    %1707 = vmatprep.subr.bf16.mxu0 %v1198
    %1708 = vmatpush2.bf16.msra.mxu0 %v1197
    %1709 = vmatprep.mubr.bf16.mxu0 %v112
    %1710 = vmatmul.mubr.bf16.gmra.mxu0 %v111
    %v1711 = vpop.f32.mrf.mxu0
    %v1712 = vadd.f32 %v380, %v1711
    %v1713 = vpop.f32.mrf.mxu0
    %v1714 = vadd.f32 %v384, %v1713
    %v1715 = vpop.f32.mrf.mxu0
    %v1716 = vadd.f32 %v380, %v1715
    %v1717 = vpop.f32.mrf.mxu0
    %v1718 = vadd.f32 %v384, %v1717
    %1719 = vdwg.mxu0
    %1720 = vmatprep.subr.bf16.mxu0 %v1258
    %1721 = vmatpush1.bf16.msra.mxu0 %v1257
    %1722 = vmatprep.subr.bf16.mxu0 %v1254
    %1723 = vmatpush1.bf16.msra.mxu0 %v1253
    %1724 = vmatprep.subr.bf16.mxu0 %v1250
    %1725 = vmatpush1.bf16.msra.mxu0 %v1249
    %1726 = vmatprep.subr.bf16.mxu0 %v1246
    %1727 = vmatpush1.bf16.msra.mxu0 %v1245
    %1728 = vmatprep.subr.bf16.mxu0 %v1242
    %1729 = vmatpush1.bf16.msra.mxu0 %v1241
    %1730 = vmatprep.subr.bf16.mxu0 %v1238
    %1731 = vmatpush1.bf16.msra.mxu0 %v1237
    %1732 = vmatprep.subr.bf16.mxu0 %v1234
    %1733 = vmatpush1.bf16.msra.mxu0 %v1233
    %1734 = vmatprep.subr.bf16.mxu0 %v1230
    %1735 = vmatpush1.bf16.msra.mxu0 %v1229
    %1736 = vmatprep.subr.bf16.mxu0 %v1290
    %1737 = vmatpush2.bf16.msra.mxu0 %v1289
    %1738 = vmatprep.subr.bf16.mxu0 %v1286
    %1739 = vmatpush2.bf16.msra.mxu0 %v1285
    %1740 = vmatprep.subr.bf16.mxu0 %v1282
    %1741 = vmatpush2.bf16.msra.mxu0 %v1281
    %1742 = vmatprep.subr.bf16.mxu0 %v1278
    %1743 = vmatpush2.bf16.msra.mxu0 %v1277
    %1744 = vmatprep.subr.bf16.mxu0 %v1274
    %1745 = vmatpush2.bf16.msra.mxu0 %v1273
    %1746 = vmatprep.subr.bf16.mxu0 %v1270
    %1747 = vmatpush2.bf16.msra.mxu0 %v1269
    %1748 = vmatprep.subr.bf16.mxu0 %v1266
    %1749 = vmatpush2.bf16.msra.mxu0 %v1265
    %1750 = vmatprep.subr.bf16.mxu0 %v1262
    %1751 = vmatpush2.bf16.msra.mxu0 %v1261
    %1752 = vmatprep.mubr.bf16.mxu0 %v114
    %1753 = vmatmul.mubr.bf16.gmra.mxu0 %v113
    %v1754 = vpop.f32.mrf.mxu0
    %v1755 = vadd.f32 %v1712, %v1754
    %v1756 = vpop.f32.mrf.mxu0
    %v1757 = vadd.f32 %v1714, %v1756
    %v1758 = vpop.f32.mrf.mxu0
    %v1759 = vadd.f32 %v1716, %v1758
    %v1760 = vpop.f32.mrf.mxu0
    %v1761 = vadd.f32 %v1718, %v1760
    %1762 = vdwg.mxu0
    %1763 = vmatprep.subr.bf16.mxu0 %v1322
    %1764 = vmatpush1.bf16.msra.mxu0 %v1321
    %1765 = vmatprep.subr.bf16.mxu0 %v1318
    %1766 = vmatpush1.bf16.msra.mxu0 %v1317
    %1767 = vmatprep.subr.bf16.mxu0 %v1314
    %1768 = vmatpush1.bf16.msra.mxu0 %v1313
    %1769 = vmatprep.subr.bf16.mxu0 %v1310
    %1770 = vmatpush1.bf16.msra.mxu0 %v1309
    %1771 = vmatprep.subr.bf16.mxu0 %v1306
    %1772 = vmatpush1.bf16.msra.mxu0 %v1305
    %1773 = vmatprep.subr.bf16.mxu0 %v1302
    %1774 = vmatpush1.bf16.msra.mxu0 %v1301
    %1775 = vmatprep.subr.bf16.mxu0 %v1298
    %1776 = vmatpush1.bf16.msra.mxu0 %v1297
    %1777 = vmatprep.subr.bf16.mxu0 %v1294
    %1778 = vmatpush1.bf16.msra.mxu0 %v1293
    %1779 = vmatprep.subr.bf16.mxu0 %v1354
    %1780 = vmatpush2.bf16.msra.mxu0 %v1353
    %1781 = vmatprep.subr.bf16.mxu0 %v1350
    %1782 = vmatpush2.bf16.msra.mxu0 %v1349
    %1783 = vmatprep.subr.bf16.mxu0 %v1346
    %1784 = vmatpush2.bf16.msra.mxu0 %v1345
    %1785 = vmatprep.subr.bf16.mxu0 %v1342
    %1786 = vmatpush2.bf16.msra.mxu0 %v1341
    %1787 = vmatprep.subr.bf16.mxu0 %v1338
    %1788 = vmatpush2.bf16.msra.mxu0 %v1337
    %1789 = vmatprep.subr.bf16.mxu0 %v1334
    %1790 = vmatpush2.bf16.msra.mxu0 %v1333
    %1791 = vmatprep.subr.bf16.mxu0 %v1330
    %1792 = vmatpush2.bf16.msra.mxu0 %v1329
    %1793 = vmatprep.subr.bf16.mxu0 %v1326
    %1794 = vmatpush2.bf16.msra.mxu0 %v1325
    %1795 = vmatprep.mubr.bf16.mxu0 %v116
    %1796 = vmatmul.mubr.bf16.gmra.mxu0 %v115
    %v1797 = vpop.f32.mrf.mxu0
    %v1798 = vadd.f32 %v1755, %v1797
    %v1799 = vpop.f32.mrf.mxu0
    %v1800 = vadd.f32 %v1757, %v1799
    %v1801 = vpop.f32.mrf.mxu0
    %v1802 = vadd.f32 %v1759, %v1801
    %v1803 = vpop.f32.mrf.mxu0
    %v1804 = vadd.f32 %v1761, %v1803
    %1805 = vdwg.mxu0
    %1806 = vmatprep.subr.bf16.mxu0 %v1386
    %1807 = vmatpush1.bf16.msra.mxu0 %v1385
    %1808 = vmatprep.subr.bf16.mxu0 %v1382
    %1809 = vmatpush1.bf16.msra.mxu0 %v1381
    %1810 = vmatprep.subr.bf16.mxu0 %v1378
    %1811 = vmatpush1.bf16.msra.mxu0 %v1377
    %1812 = vmatprep.subr.bf16.mxu0 %v1374
    %1813 = vmatpush1.bf16.msra.mxu0 %v1373
    %1814 = vmatprep.subr.bf16.mxu0 %v1370
    %1815 = vmatpush1.bf16.msra.mxu0 %v1369
    %1816 = vmatprep.subr.bf16.mxu0 %v1366
    %1817 = vmatpush1.bf16.msra.mxu0 %v1365
    %1818 = vmatprep.subr.bf16.mxu0 %v1362
    %1819 = vmatpush1.bf16.msra.mxu0 %v1361
    %1820 = vmatprep.subr.bf16.mxu0 %v1358
    %1821 = vmatpush1.bf16.msra.mxu0 %v1357
    %1822 = vmatprep.subr.bf16.mxu0 %v1418
    %1823 = vmatpush2.bf16.msra.mxu0 %v1417
    %1824 = vmatprep.subr.bf16.mxu0 %v1414
    %1825 = vmatpush2.bf16.msra.mxu0 %v1413
    %1826 = vmatprep.subr.bf16.mxu0 %v1410
    %1827 = vmatpush2.bf16.msra.mxu0 %v1409
    %1828 = vmatprep.subr.bf16.mxu0 %v1406
    %1829 = vmatpush2.bf16.msra.mxu0 %v1405
    %1830 = vmatprep.subr.bf16.mxu0 %v1402
    %1831 = vmatpush2.bf16.msra.mxu0 %v1401
    %1832 = vmatprep.subr.bf16.mxu0 %v1398
    %1833 = vmatpush2.bf16.msra.mxu0 %v1397
    %1834 = vmatprep.subr.bf16.mxu0 %v1394
    %1835 = vmatpush2.bf16.msra.mxu0 %v1393
    %1836 = vmatprep.subr.bf16.mxu0 %v1390
    %1837 = vmatpush2.bf16.msra.mxu0 %v1389
    %1838 = vmatprep.mubr.bf16.mxu0 %v118
    %1839 = vmatmul.mubr.bf16.gmra.mxu0 %v117
    %v1840 = vpop.f32.mrf.mxu0
    %v1841 = vadd.f32 %v1798, %v1840
    %v1842 = vpop.f32.mrf.mxu0
    %v1843 = vadd.f32 %v1800, %v1842
    %v1844 = vpop.f32.mrf.mxu0
    %v1845 = vadd.f32 %v1802, %v1844
    %v1846 = vpop.f32.mrf.mxu0
    %v1847 = vadd.f32 %v1804, %v1846
    %1848 = vdwg.mxu0
    %1849 = vmatprep.subr.bf16.mxu0 %v1196
    %1850 = vmatpush1.bf16.msra.mxu0 %v1195
    %1851 = vmatprep.subr.bf16.mxu0 %v1192
    %1852 = vmatpush1.bf16.msra.mxu0 %v1191
    %1853 = vmatprep.subr.bf16.mxu0 %v1188
    %1854 = vmatpush1.bf16.msra.mxu0 %v1187
    %1855 = vmatprep.subr.bf16.mxu0 %v1184
    %1856 = vmatpush1.bf16.msra.mxu0 %v1183
    %1857 = vmatprep.subr.bf16.mxu0 %v1180
    %1858 = vmatpush1.bf16.msra.mxu0 %v1179
    %1859 = vmatprep.subr.bf16.mxu0 %v1176
    %1860 = vmatpush1.bf16.msra.mxu0 %v1175
    %1861 = vmatprep.subr.bf16.mxu0 %v1172
    %1862 = vmatpush1.bf16.msra.mxu0 %v1171
    %1863 = vmatprep.subr.bf16.mxu0 %v1168
    %1864 = vmatpush1.bf16.msra.mxu0 %v1167
    %1865 = vmatprep.subr.bf16.mxu0 %v1228
    %1866 = vmatpush2.bf16.msra.mxu0 %v1227
    %1867 = vmatprep.subr.bf16.mxu0 %v1224
    %1868 = vmatpush2.bf16.msra.mxu0 %v1223
    %1869 = vmatprep.subr.bf16.mxu0 %v1220
    %1870 = vmatpush2.bf16.msra.mxu0 %v1219
    %1871 = vmatprep.subr.bf16.mxu0 %v1216
    %1872 = vmatpush2.bf16.msra.mxu0 %v1215
    %1873 = vmatprep.subr.bf16.mxu0 %v1212
    %1874 = vmatpush2.bf16.msra.mxu0 %v1211
    %1875 = vmatprep.subr.bf16.mxu0 %v1208
    %1876 = vmatpush2.bf16.msra.mxu0 %v1207
    %1877 = vmatprep.subr.bf16.mxu0 %v1204
    %1878 = vmatpush2.bf16.msra.mxu0 %v1203
    %1879 = vmatprep.subr.bf16.mxu0 %v1200
    %1880 = vmatpush2.bf16.msra.mxu0 %v1199
    %1881 = vmatprep.mubr.bf16.mxu0 %v112
    %1882 = vmatmul.mubr.bf16.gmra.mxu0 %v111
    %v1883 = vpop.f32.mrf.mxu0
    %v1884 = vadd.f32 %v388, %v1883
    %v1885 = vpop.f32.mrf.mxu0
    %v1886 = vadd.f32 %v392, %v1885
    %v1887 = vpop.f32.mrf.mxu0
    %v1888 = vadd.f32 %v388, %v1887
    %v1889 = vpop.f32.mrf.mxu0
    %v1890 = vadd.f32 %v392, %v1889
    %1891 = vdwg.mxu0
    %1892 = vmatprep.subr.bf16.mxu0 %v1260
    %1893 = vmatpush1.bf16.msra.mxu0 %v1259
    %1894 = vmatprep.subr.bf16.mxu0 %v1256
    %1895 = vmatpush1.bf16.msra.mxu0 %v1255
    %1896 = vmatprep.subr.bf16.mxu0 %v1252
    %1897 = vmatpush1.bf16.msra.mxu0 %v1251
    %1898 = vmatprep.subr.bf16.mxu0 %v1248
    %1899 = vmatpush1.bf16.msra.mxu0 %v1247
    %1900 = vmatprep.subr.bf16.mxu0 %v1244
    %1901 = vmatpush1.bf16.msra.mxu0 %v1243
    %1902 = vmatprep.subr.bf16.mxu0 %v1240
    %1903 = vmatpush1.bf16.msra.mxu0 %v1239
    %1904 = vmatprep.subr.bf16.mxu0 %v1236
    %1905 = vmatpush1.bf16.msra.mxu0 %v1235
    %1906 = vmatprep.subr.bf16.mxu0 %v1232
    %1907 = vmatpush1.bf16.msra.mxu0 %v1231
    %1908 = vmatprep.subr.bf16.mxu0 %v1292
    %1909 = vmatpush2.bf16.msra.mxu0 %v1291
    %1910 = vmatprep.subr.bf16.mxu0 %v1288
    %1911 = vmatpush2.bf16.msra.mxu0 %v1287
    %1912 = vmatprep.subr.bf16.mxu0 %v1284
    %1913 = vmatpush2.bf16.msra.mxu0 %v1283
    %1914 = vmatprep.subr.bf16.mxu0 %v1280
    %1915 = vmatpush2.bf16.msra.mxu0 %v1279
    %1916 = vmatprep.subr.bf16.mxu0 %v1276
    %1917 = vmatpush2.bf16.msra.mxu0 %v1275
    %1918 = vmatprep.subr.bf16.mxu0 %v1272
    %1919 = vmatpush2.bf16.msra.mxu0 %v1271
    %1920 = vmatprep.subr.bf16.mxu0 %v1268
    %1921 = vmatpush2.bf16.msra.mxu0 %v1267
    %1922 = vmatprep.subr.bf16.mxu0 %v1264
    %1923 = vmatpush2.bf16.msra.mxu0 %v1263
    %1924 = vmatprep.mubr.bf16.mxu0 %v114
    %1925 = vmatmul.mubr.bf16.gmra.mxu0 %v113
    %v1926 = vpop.f32.mrf.mxu0
    %v1927 = vadd.f32 %v1884, %v1926
    %v1928 = vpop.f32.mrf.mxu0
    %v1929 = vadd.f32 %v1886, %v1928
    %v1930 = vpop.f32.mrf.mxu0
    %v1931 = vadd.f32 %v1888, %v1930
    %v1932 = vpop.f32.mrf.mxu0
    %v1933 = vadd.f32 %v1890, %v1932
    %1934 = vdwg.mxu0
    %1935 = vmatprep.subr.bf16.mxu0 %v1324
    %1936 = vmatpush1.bf16.msra.mxu0 %v1323
    %1937 = vmatprep.subr.bf16.mxu0 %v1320
    %1938 = vmatpush1.bf16.msra.mxu0 %v1319
    %1939 = vmatprep.subr.bf16.mxu0 %v1316
    %1940 = vmatpush1.bf16.msra.mxu0 %v1315
    %1941 = vmatprep.subr.bf16.mxu0 %v1312
    %1942 = vmatpush1.bf16.msra.mxu0 %v1311
    %1943 = vmatprep.subr.bf16.mxu0 %v1308
    %1944 = vmatpush1.bf16.msra.mxu0 %v1307
    %1945 = vmatprep.subr.bf16.mxu0 %v1304
    %1946 = vmatpush1.bf16.msra.mxu0 %v1303
    %1947 = vmatprep.subr.bf16.mxu0 %v1300
    %1948 = vmatpush1.bf16.msra.mxu0 %v1299
    %1949 = vmatprep.subr.bf16.mxu0 %v1296
    %1950 = vmatpush1.bf16.msra.mxu0 %v1295
    %1951 = vmatprep.subr.bf16.mxu0 %v1356
    %1952 = vmatpush2.bf16.msra.mxu0 %v1355
    %1953 = vmatprep.subr.bf16.mxu0 %v1352
    %1954 = vmatpush2.bf16.msra.mxu0 %v1351
    %1955 = vmatprep.subr.bf16.mxu0 %v1348
    %1956 = vmatpush2.bf16.msra.mxu0 %v1347
    %1957 = vmatprep.subr.bf16.mxu0 %v1344
    %1958 = vmatpush2.bf16.msra.mxu0 %v1343
    %1959 = vmatprep.subr.bf16.mxu0 %v1340
    %1960 = vmatpush2.bf16.msra.mxu0 %v1339
    %1961 = vmatprep.subr.bf16.mxu0 %v1336
    %1962 = vmatpush2.bf16.msra.mxu0 %v1335
    %1963 = vmatprep.subr.bf16.mxu0 %v1332
    %1964 = vmatpush2.bf16.msra.mxu0 %v1331
    %1965 = vmatprep.subr.bf16.mxu0 %v1328
    %1966 = vmatpush2.bf16.msra.mxu0 %v1327
    %1967 = vmatprep.mubr.bf16.mxu0 %v116
    %1968 = vmatmul.mubr.bf16.gmra.mxu0 %v115
    %v1969 = vpop.f32.mrf.mxu0
    %v1970 = vadd.f32 %v1927, %v1969
    %v1971 = vpop.f32.mrf.mxu0
    %v1972 = vadd.f32 %v1929, %v1971
    %v1973 = vpop.f32.mrf.mxu0
    %v1974 = vadd.f32 %v1931, %v1973
    %v1975 = vpop.f32.mrf.mxu0
    %v1976 = vadd.f32 %v1933, %v1975
    %1977 = vdwg.mxu0
    %1978 = vmatprep.subr.bf16.mxu0 %v1388
    %1979 = vmatpush1.bf16.msra.mxu0 %v1387
    %1980 = vmatprep.subr.bf16.mxu0 %v1384
    %1981 = vmatpush1.bf16.msra.mxu0 %v1383
    %1982 = vmatprep.subr.bf16.mxu0 %v1380
    %1983 = vmatpush1.bf16.msra.mxu0 %v1379
    %1984 = vmatprep.subr.bf16.mxu0 %v1376
    %1985 = vmatpush1.bf16.msra.mxu0 %v1375
    %1986 = vmatprep.subr.bf16.mxu0 %v1372
    %1987 = vmatpush1.bf16.msra.mxu0 %v1371
    %1988 = vmatprep.subr.bf16.mxu0 %v1368
    %1989 = vmatpush1.bf16.msra.mxu0 %v1367
    %1990 = vmatprep.subr.bf16.mxu0 %v1364
    %1991 = vmatpush1.bf16.msra.mxu0 %v1363
    %1992 = vmatprep.subr.bf16.mxu0 %v1360
    %1993 = vmatpush1.bf16.msra.mxu0 %v1359
    %1994 = vmatprep.subr.bf16.mxu0 %v1420
    %1995 = vmatpush2.bf16.msra.mxu0 %v1419
    %1996 = vmatprep.subr.bf16.mxu0 %v1416
    %1997 = vmatpush2.bf16.msra.mxu0 %v1415
    %1998 = vmatprep.subr.bf16.mxu0 %v1412
    %1999 = vmatpush2.bf16.msra.mxu0 %v1411
    %2000 = vmatprep.subr.bf16.mxu0 %v1408
    %2001 = vmatpush2.bf16.msra.mxu0 %v1407
    %2002 = vmatprep.subr.bf16.mxu0 %v1404
    %2003 = vmatpush2.bf16.msra.mxu0 %v1403
    %2004 = vmatprep.subr.bf16.mxu0 %v1400
    %2005 = vmatpush2.bf16.msra.mxu0 %v1399
    %2006 = vmatprep.subr.bf16.mxu0 %v1396
    %2007 = vmatpush2.bf16.msra.mxu0 %v1395
    %2008 = vmatprep.subr.bf16.mxu0 %v1392
    %2009 = vmatpush2.bf16.msra.mxu0 %v1391
    %2010 = vmatprep.mubr.bf16.mxu0 %v118
    %2011 = vmatmul.mubr.bf16.gmra.mxu0 %v117
    %v2012 = vpop.f32.mrf.mxu0
    %v2013 = vadd.f32 %v1970, %v2012
    %v2014 = vpop.f32.mrf.mxu0
    %v2015 = vadd.f32 %v1972, %v2014
    %v2016 = vpop.f32.mrf.mxu0
    %v2017 = vadd.f32 %v1974, %v2016
    %v2018 = vpop.f32.mrf.mxu0
    %v2019 = vadd.f32 %v1976, %v2018
    %2020 = vdwg.mxu0
    %v2021 = vpack.c.bf16 %v1845, %v1841
    %v2022 = vpack.c.bf16 %v1847, %v1843
    %v2023 = vpack.c.bf16 %v2017, %v2013
    %v2024 = vpack.c.bf16 %v2019, %v2015
    %v2025 = vmul.bf16 %v2021, 1056980736
    %v2026 = vmul.bf16 %v2022, 1056980736
    %v2027 = vmul.bf16 %v2023, 1056980736
    %v2028 = vmul.bf16 %v2024, 1056980736
    %v2029 = vtanh.bf16.pop %v2025
    %v2030 = vtanh.bf16.pop %v2026
    %v2031 = vtanh.bf16.pop %v2027
    %v2032 = vtanh.bf16.pop %v2028
    %v2033 = vmul.bf16 %v2029, 1056980736
    %v2034 = vmul.bf16 %v2030, 1056980736
    %v2035 = vmul.bf16 %v2031, 1056980736
    %v2036 = vmul.bf16 %v2032, 1056980736
    %v2037 = vadd.bf16 %v2033, 1056980736
    %v2038 = vadd.bf16 %v2034, 1056980736
    %v2039 = vadd.bf16 %v2035, 1056980736
    %v2040 = vadd.bf16 %v2036, 1056980736
    %v2041 = vmul.bf16 %v2021, %v2037
    %v2042 = vmul.bf16 %v2022, %v2038
    %v2043 = vmul.bf16 %v2023, %v2039
    %v2044 = vmul.bf16 %v2024, %v2040
    %v2045 = vld [vmem:[#allocation8] sm:$0xff]
    %v2046 = vld [vmem:[#allocation8 + $0x8] sm:$0xff]
    %v2047 = vld [vmem:[#allocation8 + $0x10] sm:$0xff]
    %v2048 = vld [vmem:[#allocation8 + $0x18] sm:$0xff]
    %v2049 = vld [vmem:[#allocation8 + $0x20] sm:$0xff]
    %v2050 = vld [vmem:[#allocation8 + $0x28] sm:$0xff]
    %v2051 = vld [vmem:[#allocation8 + $0x30] sm:$0xff]
    %v2052 = vld [vmem:[#allocation8 + $0x38] sm:$0xff]
    %v2053 = vld [vmem:[#allocation8 + $0x40] sm:$0xff]
    %v2054 = vld [vmem:[#allocation8 + $0x48] sm:$0xff]
    %v2055 = vld [vmem:[#allocation8 + $0x50] sm:$0xff]
    %v2056 = vld [vmem:[#allocation8 + $0x58] sm:$0xff]
    %v2057 = vld [vmem:[#allocation8 + $0x60] sm:$0xff]
    %v2058 = vld [vmem:[#allocation8 + $0x68] sm:$0xff]
    %v2059 = vld [vmem:[#allocation8 + $0x70] sm:$0xff]
    %v2060 = vld [vmem:[#allocation8 + $0x78] sm:$0xff]
    %v2061 = vld [vmem:[#allocation8 + $0x80] sm:$0xff]
    %v2062 = vld [vmem:[#allocation8 + $0x88] sm:$0xff]
    %v2063 = vld [vmem:[#allocation8 + $0x90] sm:$0xff]
    %v2064 = vld [vmem:[#allocation8 + $0x98] sm:$0xff]
    %v2065 = vld [vmem:[#allocation8 + $0xa0] sm:$0xff]
    %v2066 = vld [vmem:[#allocation8 + $0xa8] sm:$0xff]
    %v2067 = vld [vmem:[#allocation8 + $0xb0] sm:$0xff]
    %v2068 = vld [vmem:[#allocation8 + $0xb8] sm:$0xff]
    %v2069 = vld [vmem:[#allocation8 + $0xc0] sm:$0xff]
    %v2070 = vld [vmem:[#allocation8 + $0xc8] sm:$0xff]
    %v2071 = vld [vmem:[#allocation8 + $0xd0] sm:$0xff]
    %v2072 = vld [vmem:[#allocation8 + $0xd8] sm:$0xff]
    %v2073 = vld [vmem:[#allocation8 + $0xe0] sm:$0xff]
    %v2074 = vld [vmem:[#allocation8 + $0xe8] sm:$0xff]
    %v2075 = vld [vmem:[#allocation8 + $0xf0] sm:$0xff]
    %v2076 = vld [vmem:[#allocation8 + $0xf8] sm:$0xff]
    %v2077 = vld [vmem:[#allocation8 + $0x100] sm:$0xff]
    %v2078 = vld [vmem:[#allocation8 + $0x108] sm:$0xff]
    %v2079 = vld [vmem:[#allocation8 + $0x110] sm:$0xff]
    %v2080 = vld [vmem:[#allocation8 + $0x118] sm:$0xff]
    %v2081 = vld [vmem:[#allocation8 + $0x120] sm:$0xff]
    %v2082 = vld [vmem:[#allocation8 + $0x128] sm:$0xff]
    %v2083 = vld [vmem:[#allocation8 + $0x130] sm:$0xff]
    %v2084 = vld [vmem:[#allocation8 + $0x138] sm:$0xff]
    %v2085 = vld [vmem:[#allocation8 + $0x140] sm:$0xff]
    %v2086 = vld [vmem:[#allocation8 + $0x148] sm:$0xff]
    %v2087 = vld [vmem:[#allocation8 + $0x150] sm:$0xff]
    %v2088 = vld [vmem:[#allocation8 + $0x158] sm:$0xff]
    %v2089 = vld [vmem:[#allocation8 + $0x160] sm:$0xff]
    %v2090 = vld [vmem:[#allocation8 + $0x168] sm:$0xff]
    %v2091 = vld [vmem:[#allocation8 + $0x170] sm:$0xff]
    %v2092 = vld [vmem:[#allocation8 + $0x178] sm:$0xff]
    %v2093 = vld [vmem:[#allocation8 + $0x180] sm:$0xff]
    %v2094 = vld [vmem:[#allocation8 + $0x188] sm:$0xff]
    %v2095 = vld [vmem:[#allocation8 + $0x190] sm:$0xff]
    %v2096 = vld [vmem:[#allocation8 + $0x198] sm:$0xff]
    %v2097 = vld [vmem:[#allocation8 + $0x1a0] sm:$0xff]
    %v2098 = vld [vmem:[#allocation8 + $0x1a8] sm:$0xff]
    %v2099 = vld [vmem:[#allocation8 + $0x1b0] sm:$0xff]
    %v2100 = vld [vmem:[#allocation8 + $0x1b8] sm:$0xff]
    %v2101 = vld [vmem:[#allocation8 + $0x1c0] sm:$0xff]
    %v2102 = vld [vmem:[#allocation8 + $0x1c8] sm:$0xff]
    %v2103 = vld [vmem:[#allocation8 + $0x1d0] sm:$0xff]
    %v2104 = vld [vmem:[#allocation8 + $0x1d8] sm:$0xff]
    %v2105 = vld [vmem:[#allocation8 + $0x1e0] sm:$0xff]
    %v2106 = vld [vmem:[#allocation8 + $0x1e8] sm:$0xff]
    %v2107 = vld [vmem:[#allocation8 + $0x1f0] sm:$0xff]
    %v2108 = vld [vmem:[#allocation8 + $0x1f8] sm:$0xff]
    %v2109 = vld [vmem:[%s4] sm:$0x3]
    %v2111 = vlaneseq
    %v2112 = vshrl.u32 %v2111, 7
    %v2113 = vsub.s32 0, %v2112
    %v2114 = vrot.slane %v2109, %v2113
    %v2115 = vlaneseq
    %v2116 = vshrl.u32 %v2115, 7
    %v2117 = vsub.s32 1, %v2116
    %v2118 = vrot.slane %v2109, %v2117
    %v2185 = vunpack.c.l.b16 %v2045
    %v2186 = vunpack.c.h.b16 %v2045
    %v2187 = vunpack.c.l.b16 %v2046
    %v2188 = vunpack.c.h.b16 %v2046
    %v2189 = vunpack.c.l.b16 %v2047
    %v2190 = vunpack.c.h.b16 %v2047
    %v2191 = vunpack.c.l.b16 %v2048
    %v2192 = vunpack.c.h.b16 %v2048
    %v2193 = vunpack.c.l.b16 %v2049
    %v2194 = vunpack.c.h.b16 %v2049
    %v2195 = vunpack.c.l.b16 %v2050
    %v2196 = vunpack.c.h.b16 %v2050
    %v2197 = vunpack.c.l.b16 %v2051
    %v2198 = vunpack.c.h.b16 %v2051
    %v2199 = vunpack.c.l.b16 %v2052
    %v2200 = vunpack.c.h.b16 %v2052
    %v2201 = vunpack.c.l.b16 %v2053
    %v2202 = vunpack.c.h.b16 %v2053
    %v2203 = vunpack.c.l.b16 %v2054
    %v2204 = vunpack.c.h.b16 %v2054
    %v2205 = vunpack.c.l.b16 %v2055
    %v2206 = vunpack.c.h.b16 %v2055
    %v2207 = vunpack.c.l.b16 %v2056
    %v2208 = vunpack.c.h.b16 %v2056
    %v2209 = vunpack.c.l.b16 %v2057
    %v2210 = vunpack.c.h.b16 %v2057
    %v2211 = vunpack.c.l.b16 %v2058
    %v2212 = vunpack.c.h.b16 %v2058
    %v2213 = vunpack.c.l.b16 %v2059
    %v2214 = vunpack.c.h.b16 %v2059
    %v2215 = vunpack.c.l.b16 %v2060
    %v2216 = vunpack.c.h.b16 %v2060
    %v2217 = vunpack.c.l.b16 %v2061
    %v2218 = vunpack.c.h.b16 %v2061
    %v2219 = vunpack.c.l.b16 %v2062
    %v2220 = vunpack.c.h.b16 %v2062
    %v2221 = vunpack.c.l.b16 %v2063
    %v2222 = vunpack.c.h.b16 %v2063
    %v2223 = vunpack.c.l.b16 %v2064
    %v2224 = vunpack.c.h.b16 %v2064
    %v2225 = vunpack.c.l.b16 %v2065
    %v2226 = vunpack.c.h.b16 %v2065
    %v2227 = vunpack.c.l.b16 %v2066
    %v2228 = vunpack.c.h.b16 %v2066
    %v2229 = vunpack.c.l.b16 %v2067
    %v2230 = vunpack.c.h.b16 %v2067
    %v2231 = vunpack.c.l.b16 %v2068
    %v2232 = vunpack.c.h.b16 %v2068
    %v2233 = vunpack.c.l.b16 %v2069
    %v2234 = vunpack.c.h.b16 %v2069
    %v2235 = vunpack.c.l.b16 %v2070
    %v2236 = vunpack.c.h.b16 %v2070
    %v2237 = vunpack.c.l.b16 %v2071
    %v2238 = vunpack.c.h.b16 %v2071
    %v2239 = vunpack.c.l.b16 %v2072
    %v2240 = vunpack.c.h.b16 %v2072
    %v2241 = vunpack.c.l.b16 %v2073
    %v2242 = vunpack.c.h.b16 %v2073
    %v2243 = vunpack.c.l.b16 %v2074
    %v2244 = vunpack.c.h.b16 %v2074
    %v2245 = vunpack.c.l.b16 %v2075
    %v2246 = vunpack.c.h.b16 %v2075
    %v2247 = vunpack.c.l.b16 %v2076
    %v2248 = vunpack.c.h.b16 %v2076
    %v2249 = vunpack.c.l.b16 %v2077
    %v2250 = vunpack.c.h.b16 %v2077
    %v2251 = vunpack.c.l.b16 %v2078
    %v2252 = vunpack.c.h.b16 %v2078
    %v2253 = vunpack.c.l.b16 %v2079
    %v2254 = vunpack.c.h.b16 %v2079
    %v2255 = vunpack.c.l.b16 %v2080
    %v2256 = vunpack.c.h.b16 %v2080
    %v2257 = vunpack.c.l.b16 %v2081
    %v2258 = vunpack.c.h.b16 %v2081
    %v2259 = vunpack.c.l.b16 %v2082
    %v2260 = vunpack.c.h.b16 %v2082
    %v2261 = vunpack.c.l.b16 %v2083
    %v2262 = vunpack.c.h.b16 %v2083
    %v2263 = vunpack.c.l.b16 %v2084
    %v2264 = vunpack.c.h.b16 %v2084
    %v2265 = vunpack.c.l.b16 %v2085
    %v2266 = vunpack.c.h.b16 %v2085
    %v2267 = vunpack.c.l.b16 %v2086
    %v2268 = vunpack.c.h.b16 %v2086
    %v2269 = vunpack.c.l.b16 %v2087
    %v2270 = vunpack.c.h.b16 %v2087
    %v2271 = vunpack.c.l.b16 %v2088
    %v2272 = vunpack.c.h.b16 %v2088
    %v2273 = vunpack.c.l.b16 %v2089
    %v2274 = vunpack.c.h.b16 %v2089
    %v2275 = vunpack.c.l.b16 %v2090
    %v2276 = vunpack.c.h.b16 %v2090
    %v2277 = vunpack.c.l.b16 %v2091
    %v2278 = vunpack.c.h.b16 %v2091
    %v2279 = vunpack.c.l.b16 %v2092
    %v2280 = vunpack.c.h.b16 %v2092
    %v2281 = vunpack.c.l.b16 %v2093
    %v2282 = vunpack.c.h.b16 %v2093
    %v2283 = vunpack.c.l.b16 %v2094
    %v2284 = vunpack.c.h.b16 %v2094
    %v2285 = vunpack.c.l.b16 %v2095
    %v2286 = vunpack.c.h.b16 %v2095
    %v2287 = vunpack.c.l.b16 %v2096
    %v2288 = vunpack.c.h.b16 %v2096
    %v2289 = vunpack.c.l.b16 %v2097
    %v2290 = vunpack.c.h.b16 %v2097
    %v2291 = vunpack.c.l.b16 %v2098
    %v2292 = vunpack.c.h.b16 %v2098
    %v2293 = vunpack.c.l.b16 %v2099
    %v2294 = vunpack.c.h.b16 %v2099
    %v2295 = vunpack.c.l.b16 %v2100
    %v2296 = vunpack.c.h.b16 %v2100
    %v2297 = vunpack.c.l.b16 %v2101
    %v2298 = vunpack.c.h.b16 %v2101
    %v2299 = vunpack.c.l.b16 %v2102
    %v2300 = vunpack.c.h.b16 %v2102
    %v2301 = vunpack.c.l.b16 %v2103
    %v2302 = vunpack.c.h.b16 %v2103
    %v2303 = vunpack.c.l.b16 %v2104
    %v2304 = vunpack.c.h.b16 %v2104
    %v2305 = vunpack.c.l.b16 %v2105
    %v2306 = vunpack.c.h.b16 %v2105
    %v2307 = vunpack.c.l.b16 %v2106
    %v2308 = vunpack.c.h.b16 %v2106
    %v2309 = vunpack.c.l.b16 %v2107
    %v2310 = vunpack.c.h.b16 %v2107
    %v2311 = vunpack.c.l.b16 %v2108
    %v2312 = vunpack.c.h.b16 %v2108
    %v2313 = vpack.c.b16 %v2187, %v2185
    %v2314 = vpack.c.b16 %v2188, %v2186
    %v2315 = vpack.c.b16 %v2191, %v2189
    %v2316 = vpack.c.b16 %v2192, %v2190
    %v2317 = vpack.c.b16 %v2195, %v2193
    %v2318 = vpack.c.b16 %v2196, %v2194
    %v2319 = vpack.c.b16 %v2199, %v2197
    %v2320 = vpack.c.b16 %v2200, %v2198
    %v2321 = vpack.c.b16 %v2203, %v2201
    %v2322 = vpack.c.b16 %v2204, %v2202
    %v2323 = vpack.c.b16 %v2207, %v2205
    %v2324 = vpack.c.b16 %v2208, %v2206
    %v2325 = vpack.c.b16 %v2211, %v2209
    %v2326 = vpack.c.b16 %v2212, %v2210
    %v2327 = vpack.c.b16 %v2215, %v2213
    %v2328 = vpack.c.b16 %v2216, %v2214
    %v2329 = vpack.c.b16 %v2219, %v2217
    %v2330 = vpack.c.b16 %v2220, %v2218
    %v2331 = vpack.c.b16 %v2223, %v2221
    %v2332 = vpack.c.b16 %v2224, %v2222
    %v2333 = vpack.c.b16 %v2227, %v2225
    %v2334 = vpack.c.b16 %v2228, %v2226
    %v2335 = vpack.c.b16 %v2231, %v2229
    %v2336 = vpack.c.b16 %v2232, %v2230
    %v2337 = vpack.c.b16 %v2235, %v2233
    %v2338 = vpack.c.b16 %v2236, %v2234
    %v2339 = vpack.c.b16 %v2239, %v2237
    %v2340 = vpack.c.b16 %v2240, %v2238
    %v2341 = vpack.c.b16 %v2243, %v2241
    %v2342 = vpack.c.b16 %v2244, %v2242
    %v2343 = vpack.c.b16 %v2247, %v2245
    %v2344 = vpack.c.b16 %v2248, %v2246
    %v2345 = vpack.c.b16 %v2251, %v2249
    %v2346 = vpack.c.b16 %v2252, %v2250
    %v2347 = vpack.c.b16 %v2255, %v2253
    %v2348 = vpack.c.b16 %v2256, %v2254
    %v2349 = vpack.c.b16 %v2259, %v2257
    %v2350 = vpack.c.b16 %v2260, %v2258
    %v2351 = vpack.c.b16 %v2263, %v2261
    %v2352 = vpack.c.b16 %v2264, %v2262
    %v2353 = vpack.c.b16 %v2267, %v2265
    %v2354 = vpack.c.b16 %v2268, %v2266
    %v2355 = vpack.c.b16 %v2271, %v2269
    %v2356 = vpack.c.b16 %v2272, %v2270
    %v2357 = vpack.c.b16 %v2275, %v2273
    %v2358 = vpack.c.b16 %v2276, %v2274
    %v2359 = vpack.c.b16 %v2279, %v2277
    %v2360 = vpack.c.b16 %v2280, %v2278
    %v2361 = vpack.c.b16 %v2283, %v2281
    %v2362 = vpack.c.b16 %v2284, %v2282
    %v2363 = vpack.c.b16 %v2287, %v2285
    %v2364 = vpack.c.b16 %v2288, %v2286
    %v2365 = vpack.c.b16 %v2291, %v2289
    %v2366 = vpack.c.b16 %v2292, %v2290
    %v2367 = vpack.c.b16 %v2295, %v2293
    %v2368 = vpack.c.b16 %v2296, %v2294
    %v2369 = vpack.c.b16 %v2299, %v2297
    %v2370 = vpack.c.b16 %v2300, %v2298
    %v2371 = vpack.c.b16 %v2303, %v2301
    %v2372 = vpack.c.b16 %v2304, %v2302
    %v2373 = vpack.c.b16 %v2307, %v2305
    %v2374 = vpack.c.b16 %v2308, %v2306
    %v2375 = vpack.c.b16 %v2311, %v2309
    %v2376 = vpack.c.b16 %v2312, %v2310
    %2441 = vmatprep.subr.bf16.mxu0 %v2328
    %2442 = vmatpush1.bf16.msra.mxu0 %v2327
    %2443 = vmatprep.subr.bf16.mxu0 %v2326
    %2444 = vmatpush1.bf16.msra.mxu0 %v2325
    %2445 = vmatprep.subr.bf16.mxu0 %v2324
    %2446 = vmatpush1.bf16.msra.mxu0 %v2323
    %2447 = vmatprep.subr.bf16.mxu0 %v2322
    %2448 = vmatpush1.bf16.msra.mxu0 %v2321
    %2449 = vmatprep.subr.bf16.mxu0 %v2320
    %2450 = vmatpush1.bf16.msra.mxu0 %v2319
    %2451 = vmatprep.subr.bf16.mxu0 %v2318
    %2452 = vmatpush1.bf16.msra.mxu0 %v2317
    %2453 = vmatprep.subr.bf16.mxu0 %v2316
    %2454 = vmatpush1.bf16.msra.mxu0 %v2315
    %2455 = vmatprep.subr.bf16.mxu0 %v2314
    %2456 = vmatpush1.bf16.msra.mxu0 %v2313
    %2457 = vmatprep.subr.bf16.mxu0 %v2344
    %2458 = vmatpush2.bf16.msra.mxu0 %v2343
    %2459 = vmatprep.subr.bf16.mxu0 %v2342
    %2460 = vmatpush2.bf16.msra.mxu0 %v2341
    %2461 = vmatprep.subr.bf16.mxu0 %v2340
    %2462 = vmatpush2.bf16.msra.mxu0 %v2339
    %2463 = vmatprep.subr.bf16.mxu0 %v2338
    %2464 = vmatpush2.bf16.msra.mxu0 %v2337
    %2465 = vmatprep.subr.bf16.mxu0 %v2336
    %2466 = vmatpush2.bf16.msra.mxu0 %v2335
    %2467 = vmatprep.subr.bf16.mxu0 %v2334
    %2468 = vmatpush2.bf16.msra.mxu0 %v2333
    %2469 = vmatprep.subr.bf16.mxu0 %v2332
    %2470 = vmatpush2.bf16.msra.mxu0 %v2331
    %2471 = vmatprep.subr.bf16.mxu0 %v2330
    %2472 = vmatpush2.bf16.msra.mxu0 %v2329
    %2473 = vmatprep.mubr.bf16.mxu0 %v2042
    %2474 = vmatmul.mubr.bf16.gmra.mxu0 %v2041
    %v2475 = vpop.f32.mrf.mxu0
    %v2476 = vadd.f32 %v2114, %v2475
    %v2477 = vpop.f32.mrf.mxu0
    %v2478 = vadd.f32 %v2118, %v2477
    %v2479 = vpop.f32.mrf.mxu0
    %v2480 = vadd.f32 %v2114, %v2479
    %v2481 = vpop.f32.mrf.mxu0
    %v2482 = vadd.f32 %v2118, %v2481
    %2483 = vdwg.mxu0
    %2484 = vmatprep.subr.bf16.mxu0 %v2360
    %2485 = vmatpush1.bf16.msra.mxu0 %v2359
    %2486 = vmatprep.subr.bf16.mxu0 %v2358
    %2487 = vmatpush1.bf16.msra.mxu0 %v2357
    %2488 = vmatprep.subr.bf16.mxu0 %v2356
    %2489 = vmatpush1.bf16.msra.mxu0 %v2355
    %2490 = vmatprep.subr.bf16.mxu0 %v2354
    %2491 = vmatpush1.bf16.msra.mxu0 %v2353
    %2492 = vmatprep.subr.bf16.mxu0 %v2352
    %2493 = vmatpush1.bf16.msra.mxu0 %v2351
    %2494 = vmatprep.subr.bf16.mxu0 %v2350
    %2495 = vmatpush1.bf16.msra.mxu0 %v2349
    %2496 = vmatprep.subr.bf16.mxu0 %v2348
    %2497 = vmatpush1.bf16.msra.mxu0 %v2347
    %2498 = vmatprep.subr.bf16.mxu0 %v2346
    %2499 = vmatpush1.bf16.msra.mxu0 %v2345
    %2500 = vmatprep.subr.bf16.mxu0 %v2376
    %2501 = vmatpush2.bf16.msra.mxu0 %v2375
    %2502 = vmatprep.subr.bf16.mxu0 %v2374
    %2503 = vmatpush2.bf16.msra.mxu0 %v2373
    %2504 = vmatprep.subr.bf16.mxu0 %v2372
    %2505 = vmatpush2.bf16.msra.mxu0 %v2371
    %2506 = vmatprep.subr.bf16.mxu0 %v2370
    %2507 = vmatpush2.bf16.msra.mxu0 %v2369
    %2508 = vmatprep.subr.bf16.mxu0 %v2368
    %2509 = vmatpush2.bf16.msra.mxu0 %v2367
    %2510 = vmatprep.subr.bf16.mxu0 %v2366
    %2511 = vmatpush2.bf16.msra.mxu0 %v2365
    %2512 = vmatprep.subr.bf16.mxu0 %v2364
    %2513 = vmatpush2.bf16.msra.mxu0 %v2363
    %2514 = vmatprep.subr.bf16.mxu0 %v2362
    %2515 = vmatpush2.bf16.msra.mxu0 %v2361
    %2516 = vmatprep.mubr.bf16.mxu0 %v2044
    %2517 = vmatmul.mubr.bf16.gmra.mxu0 %v2043
    %v2518 = vpop.f32.mrf.mxu0
    %v2519 = vadd.f32 %v2476, %v2518
    %v2520 = vpop.f32.mrf.mxu0
    %v2521 = vadd.f32 %v2478, %v2520
    %v2522 = vpop.f32.mrf.mxu0
    %v2523 = vadd.f32 %v2480, %v2522
    %v2524 = vpop.f32.mrf.mxu0
    %v2525 = vadd.f32 %v2482, %v2524
    %2526 = vdwg.mxu0
    %v2527 = vpack.c.bf16 %v2523, %v2519
    %v2528 = vpack.c.bf16 %v2525, %v2521
    %v2529 = vmul.bf16 %v2527, 1056980736
    %v2530 = vmul.bf16 %v2528, 1056980736
    %v2531 = vtanh.bf16.pop %v2529
    %v2532 = vtanh.bf16.pop %v2530
    %v2533 = vmul.bf16 %v2531, 1056980736
    %v2534 = vmul.bf16 %v2532, 1056980736
    %v2535 = vadd.bf16 %v2533, 1056980736
    %v2536 = vadd.bf16 %v2534, 1056980736
    %v2537 = vmul.bf16 %v2527, %v2535
    %v2538 = vmul.bf16 %v2528, %v2536
    %v2539 = vld [vmem:[#allocation10] sm:$0xf]
    %v2540 = vld [vmem:[#allocation10 + $0x4] sm:$0xf]
    %v2541 = vld [vmem:[#allocation10 + $0x8] sm:$0xf]
    %v2542 = vld [vmem:[#allocation10 + $0xc] sm:$0xf]
    %v2543 = vld [vmem:[#allocation10 + $0x10] sm:$0xf]
    %v2544 = vld [vmem:[#allocation10 + $0x14] sm:$0xf]
    %v2545 = vld [vmem:[#allocation10 + $0x18] sm:$0xf]
    %v2546 = vld [vmem:[#allocation10 + $0x1c] sm:$0xf]
    %v2547 = vld [vmem:[#allocation10 + $0x20] sm:$0xf]
    %v2548 = vld [vmem:[#allocation10 + $0x24] sm:$0xf]
    %v2549 = vld [vmem:[#allocation10 + $0x28] sm:$0xf]
    %v2550 = vld [vmem:[#allocation10 + $0x2c] sm:$0xf]
    %v2551 = vld [vmem:[#allocation10 + $0x30] sm:$0xf]
    %v2552 = vld [vmem:[#allocation10 + $0x34] sm:$0xf]
    %v2553 = vld [vmem:[#allocation10 + $0x38] sm:$0xf]
    %v2554 = vld [vmem:[#allocation10 + $0x3c] sm:$0xf]
    %v2555 = vld [vmem:[#allocation10 + $0x40] sm:$0xf]
    %v2556 = vld [vmem:[#allocation10 + $0x44] sm:$0xf]
    %v2557 = vld [vmem:[#allocation10 + $0x48] sm:$0xf]
    %v2558 = vld [vmem:[#allocation10 + $0x4c] sm:$0xf]
    %v2559 = vld [vmem:[#allocation10 + $0x50] sm:$0xf]
    %v2560 = vld [vmem:[#allocation10 + $0x54] sm:$0xf]
    %v2561 = vld [vmem:[#allocation10 + $0x58] sm:$0xf]
    %v2562 = vld [vmem:[#allocation10 + $0x5c] sm:$0xf]
    %v2563 = vld [vmem:[#allocation10 + $0x60] sm:$0xf]
    %v2564 = vld [vmem:[#allocation10 + $0x64] sm:$0xf]
    %v2565 = vld [vmem:[#allocation10 + $0x68] sm:$0xf]
    %v2566 = vld [vmem:[#allocation10 + $0x6c] sm:$0xf]
    %v2567 = vld [vmem:[#allocation10 + $0x70] sm:$0xf]
    %v2568 = vld [vmem:[#allocation10 + $0x74] sm:$0xf]
    %v2569 = vld [vmem:[#allocation10 + $0x78] sm:$0xf]
    %v2570 = vld [vmem:[#allocation10 + $0x7c] sm:$0xf]
    %v2571 = vld [vmem:[%s6] sm:$0x1]
    %v2573 = vlaneseq
    %v2574 = vshrl.u32 %v2573, 7
    %v2575 = vsub.s32 0, %v2574
    %v2576 = vrot.slane %v2571, %v2575
    %v2610 = vunpack.c.l.b16 %v2539
    %v2611 = vunpack.c.l.b16 %v2540
    %v2612 = vunpack.c.l.b16 %v2541
    %v2613 = vunpack.c.l.b16 %v2542
    %v2614 = vunpack.c.l.b16 %v2543
    %v2615 = vunpack.c.l.b16 %v2544
    %v2616 = vunpack.c.l.b16 %v2545
    %v2617 = vunpack.c.l.b16 %v2546
    %v2618 = vunpack.c.l.b16 %v2547
    %v2619 = vunpack.c.l.b16 %v2548
    %v2620 = vunpack.c.l.b16 %v2549
    %v2621 = vunpack.c.l.b16 %v2550
    %v2622 = vunpack.c.l.b16 %v2551
    %v2623 = vunpack.c.l.b16 %v2552
    %v2624 = vunpack.c.l.b16 %v2553
    %v2625 = vunpack.c.l.b16 %v2554
    %v2626 = vunpack.c.l.b16 %v2555
    %v2627 = vunpack.c.l.b16 %v2556
    %v2628 = vunpack.c.l.b16 %v2557
    %v2629 = vunpack.c.l.b16 %v2558
    %v2630 = vunpack.c.l.b16 %v2559
    %v2631 = vunpack.c.l.b16 %v2560
    %v2632 = vunpack.c.l.b16 %v2561
    %v2633 = vunpack.c.l.b16 %v2562
    %v2634 = vunpack.c.l.b16 %v2563
    %v2635 = vunpack.c.l.b16 %v2564
    %v2636 = vunpack.c.l.b16 %v2565
    %v2637 = vunpack.c.l.b16 %v2566
    %v2638 = vunpack.c.l.b16 %v2567
    %v2639 = vunpack.c.l.b16 %v2568
    %v2640 = vunpack.c.l.b16 %v2569
    %v2641 = vunpack.c.l.b16 %v2570
    %v2642 = vpack.c.b16 %v2611, %v2610
    %v2643 = vpack.c.b16 %v2613, %v2612
    %v2644 = vpack.c.b16 %v2615, %v2614
    %v2645 = vpack.c.b16 %v2617, %v2616
    %v2646 = vpack.c.b16 %v2619, %v2618
    %v2647 = vpack.c.b16 %v2621, %v2620
    %v2648 = vpack.c.b16 %v2623, %v2622
    %v2649 = vpack.c.b16 %v2625, %v2624
    %v2650 = vpack.c.b16 %v2627, %v2626
    %v2651 = vpack.c.b16 %v2629, %v2628
    %v2652 = vpack.c.b16 %v2631, %v2630
    %v2653 = vpack.c.b16 %v2633, %v2632
    %v2654 = vpack.c.b16 %v2635, %v2634
    %v2655 = vpack.c.b16 %v2637, %v2636
    %v2656 = vpack.c.b16 %v2639, %v2638
    %v2657 = vpack.c.b16 %v2641, %v2640
    %2674 = vmatprep.subr.bf16.mxu0 0
    %2675 = vmatpush1.bf16.msra.mxu0 %v2649
    %2676 = vmatprep.subr.bf16.mxu0 0
    %2677 = vmatpush1.bf16.msra.mxu0 %v2648
    %2678 = vmatprep.subr.bf16.mxu0 0
    %2679 = vmatpush1.bf16.msra.mxu0 %v2647
    %2680 = vmatprep.subr.bf16.mxu0 0
    %2681 = vmatpush1.bf16.msra.mxu0 %v2646
    %2682 = vmatprep.subr.bf16.mxu0 0
    %2683 = vmatpush1.bf16.msra.mxu0 %v2645
    %2684 = vmatprep.subr.bf16.mxu0 0
    %2685 = vmatpush1.bf16.msra.mxu0 %v2644
    %2686 = vmatprep.subr.bf16.mxu0 0
    %2687 = vmatpush1.bf16.msra.mxu0 %v2643
    %2688 = vmatprep.subr.bf16.mxu0 0
    %2689 = vmatpush1.bf16.msra.mxu0 %v2642
    %2690 = vmatprep.subr.bf16.mxu0 0
    %2691 = vmatpush2.bf16.msra.mxu0 %v2657
    %2692 = vmatprep.subr.bf16.mxu0 0
    %2693 = vmatpush2.bf16.msra.mxu0 %v2656
    %2694 = vmatprep.subr.bf16.mxu0 0
    %2695 = vmatpush2.bf16.msra.mxu0 %v2655
    %2696 = vmatprep.subr.bf16.mxu0 0
    %2697 = vmatpush2.bf16.msra.mxu0 %v2654
    %2698 = vmatprep.subr.bf16.mxu0 0
    %2699 = vmatpush2.bf16.msra.mxu0 %v2653
    %2700 = vmatprep.subr.bf16.mxu0 0
    %2701 = vmatpush2.bf16.msra.mxu0 %v2652
    %2702 = vmatprep.subr.bf16.mxu0 0
    %2703 = vmatpush2.bf16.msra.mxu0 %v2651
    %2704 = vmatprep.subr.bf16.mxu0 0
    %2705 = vmatpush2.bf16.msra.mxu0 %v2650
    %2706 = vmatprep.mubr.bf16.mxu0 %v2538
    %2707 = vmatmul.mubr.bf16.gmra.mxu0 %v2537
    %v2708 = vpop.f32.mrf.mxu0
    %v2709 = vadd.f32 %v2576, %v2708
    %v2710 = vpop.f32.mrf.mxu0
    %v2711 = vpop.f32.mrf.mxu0
    %v2712 = vadd.f32 %v2576, %v2711
    %v2713 = vpop.f32.mrf.mxu0
    %2714 = vdwg.mxu0
    %v2715 = vpack.c.bf16 %v2712, %v2709
    %v2716 = vmul.bf16 %v2715, 1056980736
    %v2717 = vtanh.bf16.pop %v2716
    %v2718 = vmul.bf16 %v2717, 1056980736
    %v2719 = vadd.bf16 %v2718, 1056980736
    %v2720 = vmul.bf16 %v2715, %v2719
    %v2722 = vunpack.c.l.b16 %v2720
    %v2723 = vunpack.c.h.b16 %v2720
    %v2724 = vpack.c.b16 %v2722, %v2722
    %v2725 = vpack.c.b16 %v2723, %v2723
    %2728 = vst [vmem:[#allocation11] sm:$0xf] %v2724
    %2729 = vst [vmem:[#allocation11 + $0x4] sm:$0xf] %v2725
    // Predicated region
    $region50: #{tpu_custom_call.1} parent=1 // pred_check
      _
    $region51: #{tpu_custom_call.1} parent=1 // pred_check_branch
      %2731 = sbr.rel (0) target = $region53
    $region52: #{tpu_custom_call.1} parent=1 // pred_region
      %s2733 = ssub.s32 128, 128
      %2734 = vsyncadd [#allocation4], %s2733
      %s2735 = sshll.u32 [#allocation11], 4
      %s2736 = int_to_ptr.vmem [resolvable:$true] %s2735
      %2741 = dma.vmem_to_hbm [thread:$0]  %s2736, 128, %s7, [#allocation4], 64, 64, 4
    $region53: #{tpu_custom_call.1} parent=1 // pred_fallthru
      _
    // Predicated region
    $region54: #{tpu_custom_call.1} parent=1 // pred_check
      _
    $region55: #{tpu_custom_call.1} parent=1 // pred_check_branch
      %2743 = sbr.rel (0) target = $region57
    $region56: #{tpu_custom_call.1} parent=1 // pred_region
      %2744 = dma.done [#allocation4], 128
    $region57: #{tpu_custom_call.1} parent=1 // pred_fallthru
      _
    %2745 = vsyncpa [#allocation3], 1
    %2746 = vsyncpa [#allocation6], 1
    %2747 = vsyncpa [#allocation9], 1
    %2748 = vsyncpa [#allocation4], 1

</llo_original>
